<compile_context>
chip_gen: v7x
topology: tpu7x:2x2x1
jax: 0.10.0
libtpu: 0.0.40
codegen_flags: <defaults>
</compile_context>

<pallas_src>
import functools
import math

import jax
import jax.numpy as jnp
from jax.experimental import pallas as pl
from jax.experimental.pallas import tpu as pltpu

LOG2 = math.log(2.0)


def _round_up(x, m):
    return ((x + m - 1) // m) * m


def _softplus(x):
    # plain softplus; the "- log(2)" ssp shift is folded into the next
    # layer's bias in prepare_node_head_params.
    return jnp.logaddexp(x, 0.0)


def node_head_mlp_kernel(x_ref, w0_ref, b0_ref, w1_ref, b1_ref, w2_ref, b2_ref,
                         o_ref, *, out_dim):
    """One node tile: x @ W0 + b0 -> sp -> @ W1 + b1' -> sp -> @ W2p + b2p.

    The final matmul uses the lane-padded W2 (cheap, VMEM-resident); only the
    first `out_dim` columns are stored to the narrow output block.
    """
    x = x_ref[...].astype(w0_ref.dtype)                               # (tn, D)
    h = jnp.dot(x, w0_ref[...], preferred_element_type=jnp.float32)   # (tn, H)
    h = _softplus(h + b0_ref[...])
    h = jnp.dot(h.astype(w1_ref.dtype), w1_ref[...],
                preferred_element_type=jnp.float32)                   # (tn, H)
    h = _softplus(h + b1_ref[...])
    y = jnp.dot(h.astype(w2_ref.dtype), w2_ref[...],
                preferred_element_type=jnp.float32)                   # (tn, Op)
    y = y + b2_ref[...]
    o_ref[...] = y[:, :out_dim].astype(o_ref.dtype)                   # narrow store


def prepare_node_head_params(params, compute_dtype=None):
    """One-time parameter prep (hoist out of the per-call hot path).

    * Folds ssp's constant "- log(2)" shift into the following layer's bias
      (exact; done in f32 before any cast).
    * Lane-pads the final layer to a multiple of 128 columns for the MXU; the
      padding never reaches HBM on the output side.
    * Optionally casts matmul operands to compute_dtype (bf16 recommended on
      v6e/v7x); biases stay f32, accumulation is always f32.
    """
    w0, b0, w1, b1, w2, b2 = params
    hidden = w0.shape[1]
    out_dim = w2.shape[1]

    b1 = b1 - LOG2 * jnp.sum(w1, axis=0, keepdims=True)
    b2 = b2 - LOG2 * jnp.sum(w2, axis=0, keepdims=True)

    o_pad = _round_up(max(out_dim, 128), 128)
    w2p = jnp.zeros((hidden, o_pad), w2.dtype).at[:, :out_dim].set(w2)
    b2p = jnp.zeros((1, o_pad), b2.dtype).at[:, :out_dim].set(b2)

    if compute_dtype is not None:
        w0 = w0.astype(compute_dtype)
        w1 = w1.astype(compute_dtype)
        w2p = w2p.astype(compute_dtype)
    b0 = b0.astype(jnp.float32)
    b1 = b1.astype(jnp.float32)
    b2p = b2p.astype(jnp.float32)

    return {
        "w0": w0, "b0": b0, "w1": w1, "b1": b1, "w2": w2p, "b2": b2p,
        "out_dim": out_dim, "compute_dtype": compute_dtype,
    }


def node_head_forward_prepared(node_features, prepared, *, tile_n=4096,
                               min_grid_steps=2):
    """Pallas implementation of NodeHead.forward (the MLP hot path)."""
    w0, b0, w1, b1, w2p, b2p = (prepared[k]
                                for k in ("w0", "b0", "w1", "b1", "w2", "b2"))
    out_dim = prepared["out_dim"]
    compute_dtype = prepared["compute_dtype"]

    n, d = node_features.shape
    hidden = w0.shape[1]
    o_pad = w2p.shape[1]
    out_dtype = node_features.dtype

    # Cast the input in the wrapper so the HBM read itself is narrow (bf16).
    if compute_dtype is not None and node_features.dtype != compute_dtype:
        node_features = node_features.astype(compute_dtype)

    # Sublane alignment: 8 rows for 4-byte, 16 for 2-byte (bf16 packing).
    itemsize = jnp.dtype(node_features.dtype).itemsize
    row_align = max(8, 32 // itemsize)

    # Tile the node axis: aim for >= min_grid_steps grid steps (so v7x's two
    # TensorCores both get work), capped at tile_n.  No input padding: the
    # ragged last block is handled by Pallas (row-wise MLP => garbage rows
    # never pollute valid rows; writeback only covers valid rows).
    tile = max(row_align, _round_up(pl.cdiv(n, min_grid_steps), row_align))
    tile = min(tile, _round_up(tile_n, row_align))
    grid = (pl.cdiv(n, tile),)

    full = lambda i: (0, 0)  # weights/biases: single block, resident across grid
    kernel = functools.partial(node_head_mlp_kernel, out_dim=out_dim)

    out = pl.pallas_call(
        kernel,
        out_shape=jax.ShapeDtypeStruct((n, out_dim), out_dtype),
        grid_spec=pltpu.PrefetchScalarGridSpec(
            num_scalar_prefetch=0,
            grid=grid,
            in_specs=[
                pl.BlockSpec((tile, d), lambda i: (i, 0)),  # node features
                pl.BlockSpec((d, hidden), full),            # W0
                pl.BlockSpec((1, hidden), full),            # b0
                pl.BlockSpec((hidden, hidden), full),        # W1
                pl.BlockSpec((1, hidden), full),            # b1 (shift-folded)
                pl.BlockSpec((hidden, o_pad), full),        # W2 (lane-padded, VMEM only)
                pl.BlockSpec((1, o_pad), full),             # b2 (lane-padded)
            ],
            out_specs=pl.BlockSpec((tile, out_dim), lambda i: (i, 0)),  # narrow
        ),
        compiler_params=pltpu.CompilerParams(
            dimension_semantics=("parallel",)),
    )(node_features, w0, b0, w1, b1, w2p, b2p)
    return out


def node_head_forward(node_features, params, *, tile_n=4096, compute_dtype=None):
    """Convenience wrapper: prep + forward (prefer hoisting the prep)."""
    prepared = prepare_node_head_params(params, compute_dtype=compute_dtype)
    return node_head_forward_prepared(node_features, prepared, tile_n=tile_n)


def init_node_head_params(key, latent_dim, mlp_hidden_dim, num_mlp_layers,
                          out_dim, dtype=jnp.float32):
    """Deterministic synthetic init matching build_mlp layer shapes.

    layer_sizes = [latent_dim] + [mlp_hidden_dim]*num_mlp_layers + [out_dim]
    Here num_mlp_layers=2 -> 3 Linear layers.
    """
    assert num_mlp_layers == 2, "this script instantiates the 2-hidden-layer case"
    sizes = [latent_dim] + [mlp_hidden_dim] * num_mlp_layers + [out_dim]
    params = []
    for i in range(len(sizes) - 1):
        key, kw, kb = jax.random.split(key, 3)
        fan_in = sizes[i]
        bound = 1.0 / math.sqrt(fan_in)
        w = jax.random.uniform(kw, (sizes[i], sizes[i + 1]), dtype,
                               minval=-bound, maxval=bound)
        b = jax.random.uniform(kb, (1, sizes[i + 1]), dtype,
                               minval=-bound, maxval=bound)
        params += [w, b]
    return tuple(params)


def node_head_forward_ref(node_features, params):
    """Pure-JAX reference (exactly the PyTorch forward semantics)."""
    w0, b0, w1, b1, w2, b2 = params
    ssp = lambda x: jnp.logaddexp(x, 0.0) - LOG2
    h = ssp(node_features @ w0 + b0)
    h = ssp(h @ w1 + b1)
    return h @ w2 + b2


if __name__ == "__main__":
    # Small, module-consistent shapes: N nodes with a latent vector each.
    latent_dim = 32        # latent_dim
    mlp_hidden_dim = 32    # mlp_hidden_dim
    num_mlp_layers = 2     # num_mlp_layers
    out_dim = 3            # target.dim (e.g. per-node 3-vector target)
    n_nodes = 200          # node count (not a multiple of 8: ragged last block)

    key = jax.random.PRNGKey(0)
    key, kx = jax.random.split(key)
    node_features = jax.random.normal(kx, (n_nodes, latent_dim), jnp.float32)
    params = init_node_head_params(key, latent_dim, mlp_hidden_dim,
                                   num_mlp_layers, out_dim)

    ref = node_head_forward_ref(node_features, params)

    # f32 path (strict tolerance). Parameter prep hoisted out of the call.
    prep_f32 = prepare_node_head_params(params)
    pred = node_head_forward_prepared(node_features, prep_f32)
    pred = jax.block_until_ready(pred)
    assert pred.shape == (n_nodes, out_dim)
    assert jnp.allclose(pred, ref, atol=2e-5, rtol=1e-5), "f32 mismatch vs reference"

    # bf16 MXU-operand path (recommended default on v6e/v7x): accumulation
    # stays f32, so only a loose check applies.
    prep_bf16 = prepare_node_head_params(params, compute_dtype=jnp.bfloat16)
    pred_bf16 = node_head_forward_prepared(node_features, prep_bf16)
    pred_bf16 = jax.block_until_ready(pred_bf16)
    assert pred_bf16.shape == (n_nodes, out_dim)
    assert float(jnp.max(jnp.abs(pred_bf16 - ref))) < 0.1, "bf16 path drifted"

    # TODO(synk): loss()/predict() involve ScalarNormalizer state and
    # per-graph segment aggregation (batch.n_node); only forward() is the
    # kernel hot path and is implemented here.
    print("KERNEL_OK")
</pallas_src>

<mosaic_0001>
module attributes {stable_mosaic.version = 11 : i64} {
  func.func @node_head_mlp_kernel(%arg0: i32, %arg1: memref<104x32xf32, #tpu.memory_space<vmem>>, %arg2: memref<32x32xf32, #tpu.memory_space<vmem>>, %arg3: memref<1x32xf32, #tpu.memory_space<vmem>>, %arg4: memref<32x32xf32, #tpu.memory_space<vmem>>, %arg5: memref<1x32xf32, #tpu.memory_space<vmem>>, %arg6: memref<32x128xf32, #tpu.memory_space<vmem>>, %arg7: memref<1x128xf32, #tpu.memory_space<vmem>>, %arg8: memref<104x3xf32, #tpu.memory_space<vmem>>) attributes {dimension_semantics = [#tpu.dimension_semantics<parallel>], iteration_bounds = array<i64: 2>, scalar_prefetch = 0 : i64, scratch_operands = 0 : i64, tpu.core_type = #tpu.core_type<tc>, window_params = [{transform_indices = @transform_0, window_bounds = array<i64: 104, 32>}, {pipeline_mode = #tpu.pipeline_mode<synchronous>, transform_indices = @transform_1, window_bounds = array<i64: 32, 32>}, {pipeline_mode = #tpu.pipeline_mode<synchronous>, transform_indices = @transform_2, window_bounds = array<i64: 1, 32>}, {pipeline_mode = #tpu.pipeline_mode<synchronous>, transform_indices = @transform_3, window_bounds = array<i64: 32, 32>}, {pipeline_mode = #tpu.pipeline_mode<synchronous>, transform_indices = @transform_4, window_bounds = array<i64: 1, 32>}, {pipeline_mode = #tpu.pipeline_mode<synchronous>, transform_indices = @transform_5, window_bounds = array<i64: 32, 128>}, {pipeline_mode = #tpu.pipeline_mode<synchronous>, transform_indices = @transform_6, window_bounds = array<i64: 1, 128>}, {transform_indices = @transform_7, window_bounds = array<i64: 104, 3>}]} {
    %c0 = arith.constant 0 : index
    %c0_0 = arith.constant 0 : index
    %0 = vector.load %arg1[%c0, %c0_0] : memref<104x32xf32, #tpu.memory_space<vmem>>, vector<104x32xf32>
    %c0_1 = arith.constant 0 : index
    %c0_2 = arith.constant 0 : index
    %1 = vector.load %arg2[%c0_1, %c0_2] : memref<32x32xf32, #tpu.memory_space<vmem>>, vector<32x32xf32>
    %cst = arith.constant dense<0.000000e+00> : vector<104x32xf32>
    %2 = tpu.matmul %0, %1, %cst {dimension_numbers = #tpu.dot_dimension_numbers<[1], [0], [0], [1], [0, 0, 1, 1], [], []>} : vector<104x32xf32>, vector<32x32xf32>, vector<104x32xf32> -> vector<104x32xf32>
    %c0_3 = arith.constant 0 : index
    %c0_4 = arith.constant 0 : index
    %3 = vector.load %arg3[%c0_3, %c0_4] : memref<1x32xf32, #tpu.memory_space<vmem>>, vector<1x32xf32>
    %4 = vector.broadcast %3 : vector<1x32xf32> to vector<104x32xf32>
    %5 = arith.addf %2, %4 : vector<104x32xf32>
    %cst_5 = arith.constant 0.000000e+00 : f32
    %6 = vector.broadcast %cst_5 : f32 to vector<104x32xf32>
    %7 = arith.maximumf %5, %6 : vector<104x32xf32>
    %8 = vector.broadcast %cst_5 : f32 to vector<104x32xf32>
    %9 = arith.subf %5, %8 : vector<104x32xf32>
    %10 = arith.cmpf one, %9, %9 : vector<104x32xf32>
    %11 = vector.broadcast %cst_5 : f32 to vector<104x32xf32>
    %12 = arith.addf %5, %11 : vector<104x32xf32>
    %13 = math.absf %9 : vector<104x32xf32>
    %cst_6 = arith.constant 0.000000e+00 : f32
    %14 = vector.broadcast %cst_6 : f32 to vector<104x32xf32>
    %15 = arith.subf %14, %13 : vector<104x32xf32>
    %16 = math.exp %15 : vector<104x32xf32>
    %17 = math.log1p %16 : vector<104x32xf32>
    %18 = arith.addf %7, %17 : vector<104x32xf32>
    %19 = arith.select %10, %12, %18 : vector<104x32xi1>, vector<104x32xf32>
    %c0_7 = arith.constant 0 : index
    %c0_8 = arith.constant 0 : index
    %20 = vector.load %arg4[%c0_7, %c0_8] : memref<32x32xf32, #tpu.memory_space<vmem>>, vector<32x32xf32>
    %cst_9 = arith.constant dense<0.000000e+00> : vector<104x32xf32>
    %21 = tpu.matmul %19, %20, %cst_9 {dimension_numbers = #tpu.dot_dimension_numbers<[1], [0], [0], [1], [0, 0, 1, 1], [], []>} : vector<104x32xf32>, vector<32x32xf32>, vector<104x32xf32> -> vector<104x32xf32>
    %c0_10 = arith.constant 0 : index
    %c0_11 = arith.constant 0 : index
    %22 = vector.load %arg5[%c0_10, %c0_11] : memref<1x32xf32, #tpu.memory_space<vmem>>, vector<1x32xf32>
    %23 = vector.broadcast %22 : vector<1x32xf32> to vector<104x32xf32>
    %24 = arith.addf %21, %23 : vector<104x32xf32>
    %cst_12 = arith.constant 0.000000e+00 : f32
    %25 = vector.broadcast %cst_12 : f32 to vector<104x32xf32>
    %26 = arith.maximumf %24, %25 : vector<104x32xf32>
    %27 = vector.broadcast %cst_12 : f32 to vector<104x32xf32>
    %28 = arith.subf %24, %27 : vector<104x32xf32>
    %29 = arith.cmpf one, %28, %28 : vector<104x32xf32>
    %30 = vector.broadcast %cst_12 : f32 to vector<104x32xf32>
    %31 = arith.addf %24, %30 : vector<104x32xf32>
    %32 = math.absf %28 : vector<104x32xf32>
    %cst_13 = arith.constant 0.000000e+00 : f32
    %33 = vector.broadcast %cst_13 : f32 to vector<104x32xf32>
    %34 = arith.subf %33, %32 : vector<104x32xf32>
    %35 = math.exp %34 : vector<104x32xf32>
    %36 = math.log1p %35 : vector<104x32xf32>
    %37 = arith.addf %26, %36 : vector<104x32xf32>
    %38 = arith.select %29, %31, %37 : vector<104x32xi1>, vector<104x32xf32>
    %c0_14 = arith.constant 0 : index
    %c0_15 = arith.constant 0 : index
    %39 = vector.load %arg6[%c0_14, %c0_15] : memref<32x128xf32, #tpu.memory_space<vmem>>, vector<32x128xf32>
    %cst_16 = arith.constant dense<0.000000e+00> : vector<104x128xf32>
    %40 = tpu.matmul %38, %39, %cst_16 {dimension_numbers = #tpu.dot_dimension_numbers<[1], [0], [0], [1], [0, 0, 1, 1], [], []>} : vector<104x32xf32>, vector<32x128xf32>, vector<104x128xf32> -> vector<104x128xf32>
    %c0_17 = arith.constant 0 : index
    %c0_18 = arith.constant 0 : index
    %41 = vector.load %arg7[%c0_17, %c0_18] : memref<1x128xf32, #tpu.memory_space<vmem>>, vector<1x128xf32>
    %42 = vector.broadcast %41 : vector<1x128xf32> to vector<104x128xf32>
    %43 = arith.addf %40, %42 : vector<104x128xf32>
    %44 = vector.extract_strided_slice %43 {offsets = [0, 0], sizes = [104, 3], strides = [1, 1]} : vector<104x128xf32> to vector<104x3xf32>
    %c0_19 = arith.constant 0 : index
    %c0_20 = arith.constant 0 : index
    %45 = vector.load %arg8[%c0_19, %c0_20] : memref<104x3xf32, #tpu.memory_space<vmem>>, vector<104x3xf32>
    tpu.vector_store %arg8[%c0_19, %c0_20], %44 {strides = array<i32>} : memref<104x3xf32, #tpu.memory_space<vmem>>, vector<104x3xf32>,
    return
  }
  func.func @transform_0(%arg0: i32) -> (i32, i32) {
    %c0_i32 = arith.constant 0 : i32
    %c0_i32_0 = arith.constant 0 : i32
    return %arg0, %c0_i32 : i32, i32
  }
  func.func @transform_1(%arg0: i32) -> (i32, i32) {
    %c0_i32 = arith.constant 0 : i32
    %c0_i32_0 = arith.constant 0 : i32
    %c0_i32_1 = arith.constant 0 : i32
    return %c0_i32, %c0_i32_0 : i32, i32
  }
  func.func @transform_2(%arg0: i32) -> (i32, i32) {
    %c0_i32 = arith.constant 0 : i32
    %c0_i32_0 = arith.constant 0 : i32
    %c0_i32_1 = arith.constant 0 : i32
    return %c0_i32, %c0_i32_0 : i32, i32
  }
  func.func @transform_3(%arg0: i32) -> (i32, i32) {
    %c0_i32 = arith.constant 0 : i32
    %c0_i32_0 = arith.constant 0 : i32
    %c0_i32_1 = arith.constant 0 : i32
    return %c0_i32, %c0_i32_0 : i32, i32
  }
  func.func @transform_4(%arg0: i32) -> (i32, i32) {
    %c0_i32 = arith.constant 0 : i32
    %c0_i32_0 = arith.constant 0 : i32
    %c0_i32_1 = arith.constant 0 : i32
    return %c0_i32, %c0_i32_0 : i32, i32
  }
  func.func @transform_5(%arg0: i32) -> (i32, i32) {
    %c0_i32 = arith.constant 0 : i32
    %c0_i32_0 = arith.constant 0 : i32
    %c0_i32_1 = arith.constant 0 : i32
    return %c0_i32, %c0_i32_0 : i32, i32
  }
  func.func @transform_6(%arg0: i32) -> (i32, i32) {
    %c0_i32 = arith.constant 0 : i32
    %c0_i32_0 = arith.constant 0 : i32
    %c0_i32_1 = arith.constant 0 : i32
    return %c0_i32, %c0_i32_0 : i32, i32
  }
  func.func @transform_7(%arg0: i32) -> (i32, i32) {
    %c0_i32 = arith.constant 0 : i32
    %c0_i32_0 = arith.constant 0 : i32
    return %arg0, %c0_i32 : i32, i32
  }
}

</mosaic_0001>

<llo_original>
// kernel: tpu_custom_call.1
$region0: #{tpu_custom_call.1}
  #allocation0 [shape = 'u32[]', space=smem, size = 0x4, offset = 0x4, fixed_abs, tag = 'smem constant byte address 0x4 - core index']
  #allocation1 [shape = 'u32[144,128]{1,0:T(1,128)}', space=vmem, size = 0x12000, scoped, tag = 'internal scratch']
  %s0 = inlined_call_operand.vmem [shape: f32[200,32], index: 0, kind: input, shape index: {}]
  %s1 = inlined_call_operand.vmem [shape: f32[32,32], index: 1, kind: input, shape index: {}]
  %s2 = inlined_call_operand.vmem [shape: f32[1,32], index: 2, kind: input, shape index: {}]
  %s3 = inlined_call_operand.vmem [shape: f32[32,32], index: 3, kind: input, shape index: {}]
  %s4 = inlined_call_operand.vmem [shape: f32[1,32], index: 4, kind: input, shape index: {}]
  %s5 = inlined_call_operand.vmem [shape: f32[32,128], index: 5, kind: input, shape index: {}]
  %s6 = inlined_call_operand.vmem [shape: f32[1,128], index: 6, kind: input, shape index: {}]
  %s7 = inlined_call_operand.vmem [shape: f32[200,3], index: 7, kind: output, shape index: {}]
  %s8 = sld [smem:[#allocation0]]
  $region109: #{tpu_custom_call.1} parent=0
    _
  %s10 = ssub.s32 1, %s8
  %s11 = scalar_select 0, %s10, %s8
  $region1: #{tpu_custom_call.1} parent=0
    #allocation2 [shape = 'u8[106496]{0}', space=vmem, size = 0x1a000, scoped, tag = 'output window, operand 0']
    loop: start=0, step=1, limit=4
    $region2: #{tpu_custom_call.1} parent=1 // loop_pre_header
      _
    $region3: #{tpu_custom_call.1} parent=1 // loop_header
      %s13 = sphi 0, %s17
      %p14 = scmp.ge.s32.totalorder %s13, 4
      %s23 = sphi 0, %s25
      %s26 = sphi 0, %s23
      %s27 = sphi 0, %s26
      %s43 = sphi 0, %s27
      %s47 = sphi 0, %s47
      %s49 = sphi 0, %s47
      %s50 = sphi 0, %s49
      %s64 = sphi 0, %s50
      %s68 = sphi 0, %s68
      %s70 = sphi 0, %s68
      %s71 = sphi 0, %s70
      %s85 = sphi 0, %s71
      %s89 = sphi 0, %s89
      %s91 = sphi 0, %s89
      %s92 = sphi 0, %s91
      %s106 = sphi 0, %s92
      %s110 = sphi 0, %s110
      %s112 = sphi 0, %s110
      %s113 = sphi 0, %s112
      %s127 = sphi 0, %s113
      %s131 = sphi 0, %s131
      %s133 = sphi 0, %s131
      %s134 = sphi 0, %s133
      %s148 = sphi 0, %s134
      %s152 = sphi 0, %s152
      %s154 = sphi 0, %s152
      %s155 = sphi 0, %s154
      %s169 = sphi 0, %s155
      %s175 = sphi 0, %s177
      %s178 = sphi 0, %s175
      %s179 = sphi 0, %s178
      %s195 = sphi 0, %s179
    $region4: #{tpu_custom_call.1} parent=1 // loop_header_branch
      %16 = sbr.rel (%p14) target = $region8
    $region5: #{tpu_custom_call.1} parent=1 // loop_body
      %s18 = ssub.s32 %s13, 1
      %s19 = ssub.s32 %s13, 2
      %s20 = sadd.s32 %s13, 1
      %s21 = ssub.s32 %s13, %s20
      %p22 = scmp.eq.s32.totalorder %s21, 0
      %s24 = sadd.s32 %s23, 1
      %s25 = scalar_select %p22, %s23, %s24
      %p28 = pneg %p22
      %p29 = scmp.eq.s32.totalorder %s13, 1
      %p30 = por %p28, %p29
      %p31 = scmp.ne.s32.totalorder %s23, %s26
      %p32 = scmp.eq.s32.totalorder %s13, 0
      %p33 = por %p31, %p32
      %p34 = scmp.ne.s32.totalorder %s23, %s26
      %p35 = scmp.eq.s32.totalorder %s18, 1
      %p36 = por %p34, %p35
      %p37 = scmp.ne.s32.totalorder %s26, %s27
      %p38 = scmp.eq.s32.totalorder %s18, 0
      %p39 = por %p37, %p38
      %p40 = scmp.ne.s32.totalorder %s26, %s27
      %p41 = scmp.eq.s32.totalorder %s19, 1
      %p42 = por %p40, %p41
      %p44 = scmp.ne.s32.totalorder %s27, %s43
      %p45 = scmp.eq.s32.totalorder %s19, 0
      %p46 = por %p44, %p45
      %s48 = sadd.s32 %s47, 1
      %p51 = scmp.eq.s32.totalorder %s13, 1
      %p52 = scmp.ne.s32.totalorder %s47, %s49
      %p53 = scmp.eq.s32.totalorder %s13, 0
      %p54 = por %p52, %p53
      %p55 = scmp.ne.s32.totalorder %s47, %s49
      %p56 = scmp.eq.s32.totalorder %s18, 1
      %p57 = por %p55, %p56
      %p58 = scmp.ne.s32.totalorder %s49, %s50
      %p59 = scmp.eq.s32.totalorder %s18, 0
      %p60 = por %p58, %p59
      %p61 = scmp.ne.s32.totalorder %s49, %s50
      %p62 = scmp.eq.s32.totalorder %s19, 1
      %p63 = por %p61, %p62
      %p65 = scmp.ne.s32.totalorder %s50, %s64
      %p66 = scmp.eq.s32.totalorder %s19, 0
      %p67 = por %p65, %p66
      %s69 = sadd.s32 %s68, 1
      %p72 = scmp.eq.s32.totalorder %s13, 1
      %p73 = scmp.ne.s32.totalorder %s68, %s70
      %p74 = scmp.eq.s32.totalorder %s13, 0
      %p75 = por %p73, %p74
      %p76 = scmp.ne.s32.totalorder %s68, %s70
      %p77 = scmp.eq.s32.totalorder %s18, 1
      %p78 = por %p76, %p77
      %p79 = scmp.ne.s32.totalorder %s70, %s71
      %p80 = scmp.eq.s32.totalorder %s18, 0
      %p81 = por %p79, %p80
      %p82 = scmp.ne.s32.totalorder %s70, %s71
      %p83 = scmp.eq.s32.totalorder %s19, 1
      %p84 = por %p82, %p83
      %p86 = scmp.ne.s32.totalorder %s71, %s85
      %p87 = scmp.eq.s32.totalorder %s19, 0
      %p88 = por %p86, %p87
      %s90 = sadd.s32 %s89, 1
      %p93 = scmp.eq.s32.totalorder %s13, 1
      %p94 = scmp.ne.s32.totalorder %s89, %s91
      %p95 = scmp.eq.s32.totalorder %s13, 0
      %p96 = por %p94, %p95
      %p97 = scmp.ne.s32.totalorder %s89, %s91
      %p98 = scmp.eq.s32.totalorder %s18, 1
      %p99 = por %p97, %p98
      %p100 = scmp.ne.s32.totalorder %s91, %s92
      %p101 = scmp.eq.s32.totalorder %s18, 0
      %p102 = por %p100, %p101
      %p103 = scmp.ne.s32.totalorder %s91, %s92
      %p104 = scmp.eq.s32.totalorder %s19, 1
      %p105 = por %p103, %p104
      %p107 = scmp.ne.s32.totalorder %s92, %s106
      %p108 = scmp.eq.s32.totalorder %s19, 0
      %p109 = por %p107, %p108
      %s111 = sadd.s32 %s110, 1
      %p114 = scmp.eq.s32.totalorder %s13, 1
      %p115 = scmp.ne.s32.totalorder %s110, %s112
      %p116 = scmp.eq.s32.totalorder %s13, 0
      %p117 = por %p115, %p116
      %p118 = scmp.ne.s32.totalorder %s110, %s112
      %p119 = scmp.eq.s32.totalorder %s18, 1
      %p120 = por %p118, %p119
      %p121 = scmp.ne.s32.totalorder %s112, %s113
      %p122 = scmp.eq.s32.totalorder %s18, 0
      %p123 = por %p121, %p122
      %p124 = scmp.ne.s32.totalorder %s112, %s113
      %p125 = scmp.eq.s32.totalorder %s19, 1
      %p126 = por %p124, %p125
      %p128 = scmp.ne.s32.totalorder %s113, %s127
      %p129 = scmp.eq.s32.totalorder %s19, 0
      %p130 = por %p128, %p129
      %s132 = sadd.s32 %s131, 1
      %p135 = scmp.eq.s32.totalorder %s13, 1
      %p136 = scmp.ne.s32.totalorder %s131, %s133
      %p137 = scmp.eq.s32.totalorder %s13, 0
      %p138 = por %p136, %p137
      %p139 = scmp.ne.s32.totalorder %s131, %s133
      %p140 = scmp.eq.s32.totalorder %s18, 1
      %p141 = por %p139, %p140
      %p142 = scmp.ne.s32.totalorder %s133, %s134
      %p143 = scmp.eq.s32.totalorder %s18, 0
      %p144 = por %p142, %p143
      %p145 = scmp.ne.s32.totalorder %s133, %s134
      %p146 = scmp.eq.s32.totalorder %s19, 1
      %p147 = por %p145, %p146
      %p149 = scmp.ne.s32.totalorder %s134, %s148
      %p150 = scmp.eq.s32.totalorder %s19, 0
      %p151 = por %p149, %p150
      %s153 = sadd.s32 %s152, 1
      %p156 = scmp.eq.s32.totalorder %s13, 1
      %p157 = scmp.ne.s32.totalorder %s152, %s154
      %p158 = scmp.eq.s32.totalorder %s13, 0
      %p159 = por %p157, %p158
      %p160 = scmp.ne.s32.totalorder %s152, %s154
      %p161 = scmp.eq.s32.totalorder %s18, 1
      %p162 = por %p160, %p161
      %p163 = scmp.ne.s32.totalorder %s154, %s155
      %p164 = scmp.eq.s32.totalorder %s18, 0
      %p165 = por %p163, %p164
      %p166 = scmp.ne.s32.totalorder %s154, %s155
      %p167 = scmp.eq.s32.totalorder %s19, 1
      %p168 = por %p166, %p167
      %p170 = scmp.ne.s32.totalorder %s155, %s169
      %p171 = scmp.eq.s32.totalorder %s19, 0
      %p172 = por %p170, %p171
      %s173 = ssub.s32 %s13, %s20
      %p174 = scmp.eq.s32.totalorder %s173, 0
      %s176 = sadd.s32 %s175, 1
      %s177 = scalar_select %p174, %s175, %s176
      %p180 = pneg %p174
      %p181 = scmp.eq.s32.totalorder %s13, 1
      %p182 = por %p180, %p181
      %p183 = scmp.ne.s32.totalorder %s175, %s178
      %p184 = scmp.eq.s32.totalorder %s13, 0
      %p185 = por %p183, %p184
      %p186 = scmp.ne.s32.totalorder %s175, %s178
      %p187 = scmp.eq.s32.totalorder %s18, 1
      %p188 = por %p186, %p187
      %p189 = scmp.ne.s32.totalorder %s178, %s179
      %p190 = scmp.eq.s32.totalorder %s18, 0
      %p191 = por %p189, %p190
      %p192 = scmp.ne.s32.totalorder %s178, %s179
      %p193 = scmp.eq.s32.totalorder %s19, 1
      %p194 = por %p192, %p193
      %p196 = scmp.ne.s32.totalorder %s179, %s195
      %p197 = scmp.eq.s32.totalorder %s19, 0
      %p198 = por %p196, %p197
      %p199 = scmp.le.s32.totalorder 1, %s13
      %p200 = scmp.lt.s32.totalorder %s13, 3
      %p201 = pnand %p199, %p200
      %p202 = pneg %p201
      // Predicated region
      $region9: #{tpu_custom_call.1} parent=5 // pred_check
        _
      $region10: #{tpu_custom_call.1} parent=5 // pred_check_branch
        %204 = sbr.rel (%p201) target = $region12
      $region11: #{tpu_custom_call.1} parent=5 // pred_region
        %s205 = ssub.s32 %s13, 1
        // Predicated region
        $region13: #{tpu_custom_call.1} parent=11 // pred_check
          %p206 = pneg %p60
        $region14: #{tpu_custom_call.1} parent=11 // pred_check_branch
          %208 = sbr.rel (%p206) target = $region16
        $region15: #{tpu_custom_call.1} parent=11 // pred_region
          _
        $region16: #{tpu_custom_call.1} parent=11 // pred_fallthru
          _
        // Predicated region
        $region17: #{tpu_custom_call.1} parent=11 // pred_check
          %p209 = pneg %p81
        $region18: #{tpu_custom_call.1} parent=11 // pred_check_branch
          %211 = sbr.rel (%p209) target = $region20
        $region19: #{tpu_custom_call.1} parent=11 // pred_region
          _
        $region20: #{tpu_custom_call.1} parent=11 // pred_fallthru
          _
        // Predicated region
        $region21: #{tpu_custom_call.1} parent=11 // pred_check
          %p212 = pneg %p102
        $region22: #{tpu_custom_call.1} parent=11 // pred_check_branch
          %214 = sbr.rel (%p212) target = $region24
        $region23: #{tpu_custom_call.1} parent=11 // pred_region
          _
        $region24: #{tpu_custom_call.1} parent=11 // pred_fallthru
          _
        // Predicated region
        $region25: #{tpu_custom_call.1} parent=11 // pred_check
          %p215 = pneg %p123
        $region26: #{tpu_custom_call.1} parent=11 // pred_check_branch
          %217 = sbr.rel (%p215) target = $region28
        $region27: #{tpu_custom_call.1} parent=11 // pred_region
          _
        $region28: #{tpu_custom_call.1} parent=11 // pred_fallthru
          _
        // Predicated region
        $region29: #{tpu_custom_call.1} parent=11 // pred_check
          %p218 = pneg %p144
        $region30: #{tpu_custom_call.1} parent=11 // pred_check_branch
          %220 = sbr.rel (%p218) target = $region32
        $region31: #{tpu_custom_call.1} parent=11 // pred_region
          _
        $region32: #{tpu_custom_call.1} parent=11 // pred_fallthru
          _
        // Predicated region
        $region33: #{tpu_custom_call.1} parent=11 // pred_check
          %p221 = pneg %p165
        $region34: #{tpu_custom_call.1} parent=11 // pred_check_branch
          %223 = sbr.rel (%p221) target = $region36
        $region35: #{tpu_custom_call.1} parent=11 // pred_region
          _
        $region36: #{tpu_custom_call.1} parent=11 // pred_fallthru
          _
      $region12: #{tpu_custom_call.1} parent=5 // pred_fallthru
        _
      %p224 = scmp.lt.s32.totalorder %s13, 2
      // Predicated region
      $region37: #{tpu_custom_call.1} parent=5 // pred_check
        %p225 = pneg %p224
      $region38: #{tpu_custom_call.1} parent=5 // pred_check_branch
        %227 = sbr.rel (%p225) target = $region40
      $region39: #{tpu_custom_call.1} parent=5 // pred_region
        // Predicated region
        $region41: #{tpu_custom_call.1} parent=39 // pred_check
          %p228 = pneg %p33
        $region42: #{tpu_custom_call.1} parent=39 // pred_check_branch
          %230 = sbr.rel (%p228) target = $region44
        $region43: #{tpu_custom_call.1} parent=39 // pred_region
          %s231 = smul.u32 13, %s13
          %s232 = ssub.s32 25, %s231
          %p233 = scmp.lt.s32.totalorder %s232, 13
          %s234 = scalar_select %p233, %s232, 13
          %s235 = smul.u32 128, %s234
          %p236 = scmp.lt.s32.totalorder %s231, 24
          %s237 = scalar_select %p236, %s231, 24
          %s238 = smul.addr %s237, 8
          %s239 = scalar_lea.vmem %s0, %s238
          %s240 = smul.u32 13, %s13
          %s241 = ssub.s32 25, %s240
          %p242 = scmp.lt.s32.totalorder %s241, 13
          %s243 = scalar_select %p242, %s241, 13
          %s244 = smul.u32 128, %s243
        $region44: #{tpu_custom_call.1} parent=39 // pred_fallthru
          _
      $region40: #{tpu_custom_call.1} parent=5 // pred_fallthru
        _
      %p245 = scmp.le.s32.totalorder 1, %s13
      %p246 = scmp.lt.s32.totalorder %s13, 3
      %p247 = pnand %p245, %p246
      %p248 = pneg %p247
      // Predicated region
      $region45: #{tpu_custom_call.1} parent=5 // pred_check
        _
      $region46: #{tpu_custom_call.1} parent=5 // pred_check_branch
        %250 = sbr.rel (%p247) target = $region48
      $region47: #{tpu_custom_call.1} parent=5 // pred_region
        %s251 = ssub.s32 %s13, 1
        %s252 = smul.u32 13, %s18
        %s253 = ssub.s32 25, %s252
        %p254 = scmp.lt.s32.totalorder %s253, 13
        %s255 = scalar_select %p254, %s253, 13
        %s256 = smul.u32 128, %s255
        %p257 = scmp.lt.s32.totalorder %s252, 24
        %s258 = scalar_select %p257, %s252, 24
        %s259 = smul.addr %s258, 8
        %s260 = scalar_lea.vmem %s0, %s259
        %p261 = pneg %p39
        %p262 = pneg %p36
        %p263 = pneg %p60
        %p264 = pneg %p57
        %p265 = pneg %p81
        %p266 = pneg %p78
        %p267 = pneg %p102
        %p268 = pneg %p99
        %p269 = pneg %p123
        %p270 = pneg %p120
        %p271 = pneg %p144
        %p272 = pneg %p141
        %p273 = pneg %p165
        %p274 = pneg %p162
        %p275 = pneg %p191
        %p276 = pneg %p188
        %s277 = sand.u32 %s178, 1
        %s278 = sand.u32 %s178, 1
        %s279 = smul.addr %s278, 104
        %s280 = scalar_lea.vmem [#allocation2], %s279
        %s281 = smul.u32 13, %s18
        %s282 = ssub.s32 25, %s281
        %p283 = scmp.lt.s32.totalorder %s282, 13
        %s284 = scalar_select %p283, %s282, 13
        %s285 = smul.u32 128, %s284
        %p286 = scmp.lt.s32.totalorder %s281, 24
        %s287 = scalar_select %p286, %s281, 24
        %s288 = smul.addr %s287, 8
        %s289 = scalar_lea.vmem %s0, %s288
        %s290 = smul.u32 13, %s18
        %s291 = ssub.s32 25, %s290
        %p292 = scmp.lt.s32.totalorder %s291, 13
        %s293 = scalar_select %p292, %s291, 13
        %s294 = smul.u32 128, %s293
        %s295 = smul.u32 13, %s18
        %s296 = ssub.s32 25, %s295
        %p297 = scmp.lt.s32.totalorder %s296, 13
        %s298 = scalar_select %p297, %s296, 13
        %s299 = smul.u32 128, %s298
        %v300 = vld [vmem:[%s289] sm:$0xff]
        %v301 = vld [vmem:[%s289 + $0x8] sm:$0xff]
        %v302 = vld [vmem:[%s289 + $0x10] sm:$0xff]
        %v303 = vld [vmem:[%s289 + $0x18] sm:$0xff]
        %v304 = vld [vmem:[%s289 + $0x20] sm:$0xff]
        %v305 = vld [vmem:[%s289 + $0x28] sm:$0xff]
        %v306 = vld [vmem:[%s289 + $0x30] sm:$0xff]
        %v307 = vld [vmem:[%s289 + $0x38] sm:$0xff]
        %v308 = vld [vmem:[%s289 + $0x40] sm:$0xff]
        %v309 = vld [vmem:[%s289 + $0x48] sm:$0xff]
        %v310 = vld [vmem:[%s289 + $0x50] sm:$0xff]
        %v311 = vld [vmem:[%s289 + $0x58] sm:$0xff]
        %v312 = vld [vmem:[%s289 + $0x60] sm:$0xff]
        %v313 = vld [vmem:[%s1] sm:$0xff]
        %v314 = vld [vmem:[%s1 + $0x8] sm:$0xff]
        %v315 = vld [vmem:[%s1 + $0x10] sm:$0xff]
        %v316 = vld [vmem:[%s1 + $0x18] sm:$0xff]
        %v317 = vld [vmem:[%s2] sm:$0x1]
        %v319 = vlaneseq
        %v320 = vshrl.u32 %v319, 7
        %v321 = vsub.s32 0, %v320
        %v322 = vrot.slane %v317, %v321
        %vm324 = vcmask 261120
        %v326 = vsel %vm324, %v300, 0
        %v329 = vsel %vm324, %v301, 0
        %v332 = vsel %vm324, %v302, 0
        %v335 = vsel %vm324, %v303, 0
        %v338 = vsel %vm324, %v304, 0
        %v341 = vsel %vm324, %v305, 0
        %v344 = vsel %vm324, %v306, 0
        %v347 = vsel %vm324, %v307, 0
        %v350 = vsel %vm324, %v308, 0
        %v353 = vsel %vm324, %v309, 0
        %v356 = vsel %vm324, %v310, 0
        %v359 = vsel %vm324, %v311, 0
        %v362 = vsel %vm324, %v312, 0
        %364 = vmatprep.subr.mxu0 0.0
        %365 = vmatpush1.msra.mxu0 %v313
        %366 = vmatprep.subr.mxu0 0.0
        %367 = vmatpush1.msra.mxu0 %v314
        %368 = vmatprep.subr.mxu0 0.0
        %369 = vmatpush1.msra.mxu0 %v315
        %370 = vmatprep.subr.mxu0 0.0
        %371 = vmatpush1.msra.mxu0 %v316
        %372 = vmatprep.subr.mxu0 0.0
        %373 = vmatpush1.msra.mxu0 0.0
        %374 = vmatprep.subr.mxu0 0.0
        %375 = vmatpush1.msra.mxu0 0.0
        %376 = vmatprep.subr.mxu0 0.0
        %377 = vmatpush1.msra.mxu0 0.0
        %378 = vmatprep.subr.mxu0 0.0
        %379 = vmatpush1.msra.mxu0 0.0
        %380 = vmatprep.subr.mxu0 0.0
        %381 = vmatpush1.msra.mxu0 0.0
        %382 = vmatprep.subr.mxu0 0.0
        %383 = vmatpush1.msra.mxu0 0.0
        %384 = vmatprep.subr.mxu0 0.0
        %385 = vmatpush1.msra.mxu0 0.0
        %386 = vmatprep.subr.mxu0 0.0
        %387 = vmatpush1.msra.mxu0 0.0
        %388 = vmatprep.subr.mxu0 0.0
        %389 = vmatpush1.msra.mxu0 0.0
        %390 = vmatprep.subr.mxu0 0.0
        %391 = vmatpush1.msra.mxu0 0.0
        %392 = vmatprep.subr.mxu0 0.0
        %393 = vmatpush1.msra.mxu0 0.0
        %394 = vmatprep.subr.mxu0 0.0
        %395 = vmatpush1.msra.mxu0 0.0
        %396 = vmatprep.subr.mxu0 0.0
        %397 = vmatpush1.msra.mxu0 0.0
        %398 = vmatprep.subr.mxu0 0.0
        %399 = vmatpush1.msra.mxu0 0.0
        %400 = vmatprep.subr.mxu0 0.0
        %401 = vmatpush1.msra.mxu0 0.0
        %402 = vmatprep.subr.mxu0 0.0
        %403 = vmatpush1.msra.mxu0 0.0
        %404 = vmatprep.subr.mxu0 0.0
        %405 = vmatpush1.msra.mxu0 0.0
        %406 = vmatprep.subr.mxu0 0.0
        %407 = vmatpush1.msra.mxu0 0.0
        %408 = vmatprep.subr.mxu0 0.0
        %409 = vmatpush1.msra.mxu0 0.0
        %410 = vmatprep.subr.mxu0 0.0
        %411 = vmatpush1.msra.mxu0 0.0
        %412 = vmatprep.subr.mxu0 0.0
        %413 = vmatpush1.msra.mxu0 0.0
        %414 = vmatprep.subr.mxu0 0.0
        %415 = vmatpush1.msra.mxu0 0.0
        %416 = vmatprep.subr.mxu0 0.0
        %417 = vmatpush1.msra.mxu0 0.0
        %418 = vmatprep.subr.mxu0 0.0
        %419 = vmatpush1.msra.mxu0 0.0
        %420 = vmatprep.subr.mxu0 0.0
        %421 = vmatpush1.msra.mxu0 0.0
        %422 = vmatprep.subr.mxu0 0.0
        %423 = vmatpush1.msra.mxu0 0.0
        %424 = vmatprep.subr.mxu0 0.0
        %425 = vmatpush1.msra.mxu0 0.0
        %426 = vmatprep.subr.mxu0 0.0
        %427 = vmatpush1.msra.mxu0 0.0
        %428 = vmatprep.mubr.f32.mxu0 0.0
        %429 = vmatmul.mubr.f32.gmra.mrb[0].mxu0 %v326
        %v430 = vpop.f32.mrb[0].mxu0
        %v431 = vadd.f32 %v322, %v430
        %v432 = vpop.f32.mrb[0].mxu0
        %433 = vmatprep.mubr.f32.mxu0 0.0
        %434 = vmatmul.mubr.f32.gmra.mrb[0].mxu0 %v329
        %v435 = vpop.f32.mrb[0].mxu0
        %v436 = vadd.f32 %v322, %v435
        %v437 = vpop.f32.mrb[0].mxu0
        %438 = vmatprep.mubr.f32.mxu0 0.0
        %439 = vmatmul.mubr.f32.gmra.mrb[0].mxu0 %v332
        %v440 = vpop.f32.mrb[0].mxu0
        %v441 = vadd.f32 %v322, %v440
        %v442 = vpop.f32.mrb[0].mxu0
        %443 = vmatprep.mubr.f32.mxu0 0.0
        %444 = vmatmul.mubr.f32.gmra.mrb[0].mxu0 %v335
        %v445 = vpop.f32.mrb[0].mxu0
        %v446 = vadd.f32 %v322, %v445
        %v447 = vpop.f32.mrb[0].mxu0
        %448 = vmatprep.mubr.f32.mxu0 0.0
        %449 = vmatmul.mubr.f32.gmra.mrb[0].mxu0 %v338
        %v450 = vpop.f32.mrb[0].mxu0
        %v451 = vadd.f32 %v322, %v450
        %v452 = vpop.f32.mrb[0].mxu0
        %453 = vmatprep.mubr.f32.mxu0 0.0
        %454 = vmatmul.mubr.f32.gmra.mrb[0].mxu0 %v341
        %v455 = vpop.f32.mrb[0].mxu0
        %v456 = vadd.f32 %v322, %v455
        %v457 = vpop.f32.mrb[0].mxu0
        %458 = vmatprep.mubr.f32.mxu0 0.0
        %459 = vmatmul.mubr.f32.gmra.mrb[0].mxu0 %v344
        %v460 = vpop.f32.mrb[0].mxu0
        %v461 = vadd.f32 %v322, %v460
        %v462 = vpop.f32.mrb[0].mxu0
        %463 = vmatprep.mubr.f32.mxu0 0.0
        %464 = vmatmul.mubr.f32.gmra.mrb[0].mxu0 %v347
        %v465 = vpop.f32.mrb[0].mxu0
        %v466 = vadd.f32 %v322, %v465
        %v467 = vpop.f32.mrb[0].mxu0
        %468 = vmatprep.mubr.f32.mxu0 0.0
        %469 = vmatmul.mubr.f32.gmra.mrb[0].mxu0 %v350
        %v470 = vpop.f32.mrb[0].mxu0
        %v471 = vadd.f32 %v322, %v470
        %v472 = vpop.f32.mrb[0].mxu0
        %473 = vmatprep.mubr.f32.mxu0 0.0
        %474 = vmatmul.mubr.f32.gmra.mrb[0].mxu0 %v353
        %v475 = vpop.f32.mrb[0].mxu0
        %v476 = vadd.f32 %v322, %v475
        %v477 = vpop.f32.mrb[0].mxu0
        %478 = vmatprep.mubr.f32.mxu0 0.0
        %479 = vmatmul.mubr.f32.gmra.mrb[0].mxu0 %v356
        %v480 = vpop.f32.mrb[0].mxu0
        %v481 = vadd.f32 %v322, %v480
        %v482 = vpop.f32.mrb[0].mxu0
        %483 = vmatprep.mubr.f32.mxu0 0.0
        %484 = vmatmul.mubr.f32.gmra.mrb[0].mxu0 %v359
        %v485 = vpop.f32.mrb[0].mxu0
        %v486 = vadd.f32 %v322, %v485
        %v487 = vpop.f32.mrb[0].mxu0
        %488 = vmatprep.mubr.f32.mxu0 0.0
        %489 = vmatmul.mubr.f32.gmra.mrb[0].mxu0 %v362
        %v490 = vpop.f32.mrb[0].mxu0
        %v491 = vadd.f32 %v322, %v490
        %v492 = vpop.f32.mrb[0].mxu0
        %493 = vdwg.mxu0
        %v494 = vmax.f32 %v431, 0.0
        %v495 = vmax.f32 %v436, 0.0
        %v496 = vmax.f32 %v441, 0.0
        %v497 = vmax.f32 %v446, 0.0
        %v498 = vmax.f32 %v451, 0.0
        %v499 = vmax.f32 %v456, 0.0
        %v500 = vmax.f32 %v461, 0.0
        %v501 = vmax.f32 %v466, 0.0
        %v502 = vmax.f32 %v471, 0.0
        %v503 = vmax.f32 %v476, 0.0
        %v504 = vmax.f32 %v481, 0.0
        %v505 = vmax.f32 %v486, 0.0
        %v506 = vmax.f32 %v491, 0.0
        %vm507 = vcmp.ne.f32.partialorder %v431, %v431
        %vm508 = vcmp.ne.f32.partialorder %v436, %v436
        %vm509 = vcmp.ne.f32.partialorder %v441, %v441
        %vm510 = vcmp.ne.f32.partialorder %v446, %v446
        %vm511 = vcmp.ne.f32.partialorder %v451, %v451
        %vm512 = vcmp.ne.f32.partialorder %v456, %v456
        %vm513 = vcmp.ne.f32.partialorder %v461, %v461
        %vm514 = vcmp.ne.f32.partialorder %v466, %v466
        %vm515 = vcmp.ne.f32.partialorder %v471, %v471
        %vm516 = vcmp.ne.f32.partialorder %v476, %v476
        %vm517 = vcmp.ne.f32.partialorder %v481, %v481
        %vm518 = vcmp.ne.f32.partialorder %v486, %v486
        %vm519 = vcmp.ne.f32.partialorder %v491, %v491
        %v520 = vadd.f32 %v431, 0.0
        %v521 = vadd.f32 %v436, 0.0
        %v522 = vadd.f32 %v441, 0.0
        %v523 = vadd.f32 %v446, 0.0
        %v524 = vadd.f32 %v451, 0.0
        %v525 = vadd.f32 %v456, 0.0
        %v526 = vadd.f32 %v461, 0.0
        %v527 = vadd.f32 %v466, 0.0
        %v528 = vadd.f32 %v471, 0.0
        %v529 = vadd.f32 %v476, 0.0
        %v530 = vadd.f32 %v481, 0.0
        %v531 = vadd.f32 %v486, 0.0
        %v532 = vadd.f32 %v491, 0.0
        %v533 = vand.u32 2147483647, %v431
        %v534 = vand.u32 2147483647, %v436
        %v535 = vand.u32 2147483647, %v441
        %v536 = vand.u32 2147483647, %v446
        %v537 = vand.u32 2147483647, %v451
        %v538 = vand.u32 2147483647, %v456
        %v539 = vand.u32 2147483647, %v461
        %v540 = vand.u32 2147483647, %v466
        %v541 = vand.u32 2147483647, %v471
        %v542 = vand.u32 2147483647, %v476
        %v543 = vand.u32 2147483647, %v481
        %v544 = vand.u32 2147483647, %v486
        %v545 = vand.u32 2147483647, %v491
        %v546 = vsub.f32 0.0, %v533
        %v547 = vsub.f32 0.0, %v534
        %v548 = vsub.f32 0.0, %v535
        %v549 = vsub.f32 0.0, %v536
        %v550 = vsub.f32 0.0, %v537
        %v551 = vsub.f32 0.0, %v538
        %v552 = vsub.f32 0.0, %v539
        %v553 = vsub.f32 0.0, %v540
        %v554 = vsub.f32 0.0, %v541
        %v555 = vsub.f32 0.0, %v542
        %v556 = vsub.f32 0.0, %v543
        %v557 = vsub.f32 0.0, %v544
        %v558 = vsub.f32 0.0, %v545
        %v559 = vmul.f32 %v546, 1.442695
        %v560 = vpow.pop %v559
        %v561 = vmul.f32 %v547, 1.442695
        %v562 = vpow.pop %v561
        %v563 = vmul.f32 %v548, 1.442695
        %v564 = vpow.pop %v563
        %v565 = vmul.f32 %v549, 1.442695
        %v566 = vpow.pop %v565
        %v567 = vmul.f32 %v550, 1.442695
        %v568 = vpow.pop %v567
        %v569 = vmul.f32 %v551, 1.442695
        %v570 = vpow.pop %v569
        %v571 = vmul.f32 %v552, 1.442695
        %v572 = vpow.pop %v571
        %v573 = vmul.f32 %v553, 1.442695
        %v574 = vpow.pop %v573
        %v575 = vmul.f32 %v554, 1.442695
        %v576 = vpow.pop %v575
        %v577 = vmul.f32 %v555, 1.442695
        %v578 = vpow.pop %v577
        %v579 = vmul.f32 %v556, 1.442695
        %v580 = vpow.pop %v579
        %v581 = vmul.f32 %v557, 1.442695
        %v582 = vpow.pop %v581
        %v583 = vmul.f32 %v558, 1.442695
        %v584 = vpow.pop %v583
        %v585 = vadd.f32 %v560, 1.0
        %v586 = vlog2.pop %v585
        %v587 = vmul.f32 %v586, 0.6931472
        %v588 = vmul.f32 -0.5, %v560
        %v589 = vadd.f32 %v588, 1.0
        %v590 = vmul.f32 %v589, %v560
        %v591 = vand.u32 2147483647, %v560
        %vm592 = vcmp.lt.f32.partialorder %v591, 0.0004427343
        %v593 = vsel %vm592, %v590, %v587
        %v594 = vadd.f32 %v562, 1.0
        %v595 = vlog2.pop %v594
        %v596 = vmul.f32 %v595, 0.6931472
        %v597 = vmul.f32 -0.5, %v562
        %v598 = vadd.f32 %v597, 1.0
        %v599 = vmul.f32 %v598, %v562
        %v600 = vand.u32 2147483647, %v562
        %vm601 = vcmp.lt.f32.partialorder %v600, 0.0004427343
        %v602 = vsel %vm601, %v599, %v596
        %v603 = vadd.f32 %v564, 1.0
        %v604 = vlog2.pop %v603
        %v605 = vmul.f32 %v604, 0.6931472
        %v606 = vmul.f32 -0.5, %v564
        %v607 = vadd.f32 %v606, 1.0
        %v608 = vmul.f32 %v607, %v564
        %v609 = vand.u32 2147483647, %v564
        %vm610 = vcmp.lt.f32.partialorder %v609, 0.0004427343
        %v611 = vsel %vm610, %v608, %v605
        %v612 = vadd.f32 %v566, 1.0
        %v613 = vlog2.pop %v612
        %v614 = vmul.f32 %v613, 0.6931472
        %v615 = vmul.f32 -0.5, %v566
        %v616 = vadd.f32 %v615, 1.0
        %v617 = vmul.f32 %v616, %v566
        %v618 = vand.u32 2147483647, %v566
        %vm619 = vcmp.lt.f32.partialorder %v618, 0.0004427343
        %v620 = vsel %vm619, %v617, %v614
        %v621 = vadd.f32 %v568, 1.0
        %v622 = vlog2.pop %v621
        %v623 = vmul.f32 %v622, 0.6931472
        %v624 = vmul.f32 -0.5, %v568
        %v625 = vadd.f32 %v624, 1.0
        %v626 = vmul.f32 %v625, %v568
        %v627 = vand.u32 2147483647, %v568
        %vm628 = vcmp.lt.f32.partialorder %v627, 0.0004427343
        %v629 = vsel %vm628, %v626, %v623
        %v630 = vadd.f32 %v570, 1.0
        %v631 = vlog2.pop %v630
        %v632 = vmul.f32 %v631, 0.6931472
        %v633 = vmul.f32 -0.5, %v570
        %v634 = vadd.f32 %v633, 1.0
        %v635 = vmul.f32 %v634, %v570
        %v636 = vand.u32 2147483647, %v570
        %vm637 = vcmp.lt.f32.partialorder %v636, 0.0004427343
        %v638 = vsel %vm637, %v635, %v632
        %v639 = vadd.f32 %v572, 1.0
        %v640 = vlog2.pop %v639
        %v641 = vmul.f32 %v640, 0.6931472
        %v642 = vmul.f32 -0.5, %v572
        %v643 = vadd.f32 %v642, 1.0
        %v644 = vmul.f32 %v643, %v572
        %v645 = vand.u32 2147483647, %v572
        %vm646 = vcmp.lt.f32.partialorder %v645, 0.0004427343
        %v647 = vsel %vm646, %v644, %v641
        %v648 = vadd.f32 %v574, 1.0
        %v649 = vlog2.pop %v648
        %v650 = vmul.f32 %v649, 0.6931472
        %v651 = vmul.f32 -0.5, %v574
        %v652 = vadd.f32 %v651, 1.0
        %v653 = vmul.f32 %v652, %v574
        %v654 = vand.u32 2147483647, %v574
        %vm655 = vcmp.lt.f32.partialorder %v654, 0.0004427343
        %v656 = vsel %vm655, %v653, %v650
        %v657 = vadd.f32 %v576, 1.0
        %v658 = vlog2.pop %v657
        %v659 = vmul.f32 %v658, 0.6931472
        %v660 = vmul.f32 -0.5, %v576
        %v661 = vadd.f32 %v660, 1.0
        %v662 = vmul.f32 %v661, %v576
        %v663 = vand.u32 2147483647, %v576
        %vm664 = vcmp.lt.f32.partialorder %v663, 0.0004427343
        %v665 = vsel %vm664, %v662, %v659
        %v666 = vadd.f32 %v578, 1.0
        %v667 = vlog2.pop %v666
        %v668 = vmul.f32 %v667, 0.6931472
        %v669 = vmul.f32 -0.5, %v578
        %v670 = vadd.f32 %v669, 1.0
        %v671 = vmul.f32 %v670, %v578
        %v672 = vand.u32 2147483647, %v578
        %vm673 = vcmp.lt.f32.partialorder %v672, 0.0004427343
        %v674 = vsel %vm673, %v671, %v668
        %v675 = vadd.f32 %v580, 1.0
        %v676 = vlog2.pop %v675
        %v677 = vmul.f32 %v676, 0.6931472
        %v678 = vmul.f32 -0.5, %v580
        %v679 = vadd.f32 %v678, 1.0
        %v680 = vmul.f32 %v679, %v580
        %v681 = vand.u32 2147483647, %v580
        %vm682 = vcmp.lt.f32.partialorder %v681, 0.0004427343
        %v683 = vsel %vm682, %v680, %v677
        %v684 = vadd.f32 %v582, 1.0
        %v685 = vlog2.pop %v684
        %v686 = vmul.f32 %v685, 0.6931472
        %v687 = vmul.f32 -0.5, %v582
        %v688 = vadd.f32 %v687, 1.0
        %v689 = vmul.f32 %v688, %v582
        %v690 = vand.u32 2147483647, %v582
        %vm691 = vcmp.lt.f32.partialorder %v690, 0.0004427343
        %v692 = vsel %vm691, %v689, %v686
        %v693 = vadd.f32 %v584, 1.0
        %v694 = vlog2.pop %v693
        %v695 = vmul.f32 %v694, 0.6931472
        %v696 = vmul.f32 -0.5, %v584
        %v697 = vadd.f32 %v696, 1.0
        %v698 = vmul.f32 %v697, %v584
        %v699 = vand.u32 2147483647, %v584
        %vm700 = vcmp.lt.f32.partialorder %v699, 0.0004427343
        %v701 = vsel %vm700, %v698, %v695
        %v702 = vadd.f32 %v494, %v593
        %v703 = vadd.f32 %v495, %v602
        %v704 = vadd.f32 %v496, %v611
        %v705 = vadd.f32 %v497, %v620
        %v706 = vadd.f32 %v498, %v629
        %v707 = vadd.f32 %v499, %v638
        %v708 = vadd.f32 %v500, %v647
        %v709 = vadd.f32 %v501, %v656
        %v710 = vadd.f32 %v502, %v665
        %v711 = vadd.f32 %v503, %v674
        %v712 = vadd.f32 %v504, %v683
        %v713 = vadd.f32 %v505, %v692
        %v714 = vadd.f32 %v506, %v701
        %v715 = vsel %vm507, %v520, %v702
        %v716 = vsel %vm508, %v521, %v703
        %v717 = vsel %vm509, %v522, %v704
        %v718 = vsel %vm510, %v523, %v705
        %v719 = vsel %vm511, %v524, %v706
        %v720 = vsel %vm512, %v525, %v707
        %v721 = vsel %vm513, %v526, %v708
        %v722 = vsel %vm514, %v527, %v709
        %v723 = vsel %vm515, %v528, %v710
        %v724 = vsel %vm516, %v529, %v711
        %v725 = vsel %vm517, %v530, %v712
        %v726 = vsel %vm518, %v531, %v713
        %v727 = vsel %vm519, %v532, %v714
        %v728 = vld [vmem:[%s3] sm:$0xff]
        %v729 = vld [vmem:[%s3 + $0x8] sm:$0xff]
        %v730 = vld [vmem:[%s3 + $0x10] sm:$0xff]
        %v731 = vld [vmem:[%s3 + $0x18] sm:$0xff]
        %v732 = vld [vmem:[%s4] sm:$0x1]
        %v734 = vlaneseq
        %v735 = vshrl.u32 %v734, 7
        %v736 = vsub.s32 0, %v735
        %v737 = vrot.slane %v732, %v736
        %v740 = vsel %vm324, %v715, 0
        %v743 = vsel %vm324, %v716, 0
        %v746 = vsel %vm324, %v717, 0
        %v749 = vsel %vm324, %v718, 0
        %v752 = vsel %vm324, %v719, 0
        %v755 = vsel %vm324, %v720, 0
        %v758 = vsel %vm324, %v721, 0
        %v761 = vsel %vm324, %v722, 0
        %v764 = vsel %vm324, %v723, 0
        %v767 = vsel %vm324, %v724, 0
        %v770 = vsel %vm324, %v725, 0
        %v773 = vsel %vm324, %v726, 0
        %v776 = vsel %vm324, %v727, 0
        %778 = vmatprep.subr.mxu0 0.0
        %779 = vmatpush1.msra.mxu0 %v728
        %780 = vmatprep.subr.mxu0 0.0
        %781 = vmatpush1.msra.mxu0 %v729
        %782 = vmatprep.subr.mxu0 0.0
        %783 = vmatpush1.msra.mxu0 %v730
        %784 = vmatprep.subr.mxu0 0.0
        %785 = vmatpush1.msra.mxu0 %v731
        %786 = vmatprep.subr.mxu0 0.0
        %787 = vmatpush1.msra.mxu0 0.0
        %788 = vmatprep.subr.mxu0 0.0
        %789 = vmatpush1.msra.mxu0 0.0
        %790 = vmatprep.subr.mxu0 0.0
        %791 = vmatpush1.msra.mxu0 0.0
        %792 = vmatprep.subr.mxu0 0.0
        %793 = vmatpush1.msra.mxu0 0.0
        %794 = vmatprep.subr.mxu0 0.0
        %795 = vmatpush1.msra.mxu0 0.0
        %796 = vmatprep.subr.mxu0 0.0
        %797 = vmatpush1.msra.mxu0 0.0
        %798 = vmatprep.subr.mxu0 0.0
        %799 = vmatpush1.msra.mxu0 0.0
        %800 = vmatprep.subr.mxu0 0.0
        %801 = vmatpush1.msra.mxu0 0.0
        %802 = vmatprep.subr.mxu0 0.0
        %803 = vmatpush1.msra.mxu0 0.0
        %804 = vmatprep.subr.mxu0 0.0
        %805 = vmatpush1.msra.mxu0 0.0
        %806 = vmatprep.subr.mxu0 0.0
        %807 = vmatpush1.msra.mxu0 0.0
        %808 = vmatprep.subr.mxu0 0.0
        %809 = vmatpush1.msra.mxu0 0.0
        %810 = vmatprep.subr.mxu0 0.0
        %811 = vmatpush1.msra.mxu0 0.0
        %812 = vmatprep.subr.mxu0 0.0
        %813 = vmatpush1.msra.mxu0 0.0
        %814 = vmatprep.subr.mxu0 0.0
        %815 = vmatpush1.msra.mxu0 0.0
        %816 = vmatprep.subr.mxu0 0.0
        %817 = vmatpush1.msra.mxu0 0.0
        %818 = vmatprep.subr.mxu0 0.0
        %819 = vmatpush1.msra.mxu0 0.0
        %820 = vmatprep.subr.mxu0 0.0
        %821 = vmatpush1.msra.mxu0 0.0
        %822 = vmatprep.subr.mxu0 0.0
        %823 = vmatpush1.msra.mxu0 0.0
        %824 = vmatprep.subr.mxu0 0.0
        %825 = vmatpush1.msra.mxu0 0.0
        %826 = vmatprep.subr.mxu0 0.0
        %827 = vmatpush1.msra.mxu0 0.0
        %828 = vmatprep.subr.mxu0 0.0
        %829 = vmatpush1.msra.mxu0 0.0
        %830 = vmatprep.subr.mxu0 0.0
        %831 = vmatpush1.msra.mxu0 0.0
        %832 = vmatprep.subr.mxu0 0.0
        %833 = vmatpush1.msra.mxu0 0.0
        %834 = vmatprep.subr.mxu0 0.0
        %835 = vmatpush1.msra.mxu0 0.0
        %836 = vmatprep.subr.mxu0 0.0
        %837 = vmatpush1.msra.mxu0 0.0
        %838 = vmatprep.subr.mxu0 0.0
        %839 = vmatpush1.msra.mxu0 0.0
        %840 = vmatprep.subr.mxu0 0.0
        %841 = vmatpush1.msra.mxu0 0.0
        %842 = vmatprep.mubr.f32.mxu0 0.0
        %843 = vmatmul.mubr.f32.gmra.mrb[0].mxu0 %v740
        %v844 = vpop.f32.mrb[0].mxu0
        %v845 = vadd.f32 %v737, %v844
        %v846 = vpop.f32.mrb[0].mxu0
        %847 = vmatprep.mubr.f32.mxu0 0.0
        %848 = vmatmul.mubr.f32.gmra.mrb[0].mxu0 %v743
        %v849 = vpop.f32.mrb[0].mxu0
        %v850 = vadd.f32 %v737, %v849
        %v851 = vpop.f32.mrb[0].mxu0
        %852 = vmatprep.mubr.f32.mxu0 0.0
        %853 = vmatmul.mubr.f32.gmra.mrb[0].mxu0 %v746
        %v854 = vpop.f32.mrb[0].mxu0
        %v855 = vadd.f32 %v737, %v854
        %v856 = vpop.f32.mrb[0].mxu0
        %857 = vmatprep.mubr.f32.mxu0 0.0
        %858 = vmatmul.mubr.f32.gmra.mrb[0].mxu0 %v749
        %v859 = vpop.f32.mrb[0].mxu0
        %v860 = vadd.f32 %v737, %v859
        %v861 = vpop.f32.mrb[0].mxu0
        %862 = vmatprep.mubr.f32.mxu0 0.0
        %863 = vmatmul.mubr.f32.gmra.mrb[0].mxu0 %v752
        %v864 = vpop.f32.mrb[0].mxu0
        %v865 = vadd.f32 %v737, %v864
        %v866 = vpop.f32.mrb[0].mxu0
        %867 = vmatprep.mubr.f32.mxu0 0.0
        %868 = vmatmul.mubr.f32.gmra.mrb[0].mxu0 %v755
        %v869 = vpop.f32.mrb[0].mxu0
        %v870 = vadd.f32 %v737, %v869
        %v871 = vpop.f32.mrb[0].mxu0
        %872 = vmatprep.mubr.f32.mxu0 0.0
        %873 = vmatmul.mubr.f32.gmra.mrb[0].mxu0 %v758
        %v874 = vpop.f32.mrb[0].mxu0
        %v875 = vadd.f32 %v737, %v874
        %v876 = vpop.f32.mrb[0].mxu0
        %877 = vmatprep.mubr.f32.mxu0 0.0
        %878 = vmatmul.mubr.f32.gmra.mrb[0].mxu0 %v761
        %v879 = vpop.f32.mrb[0].mxu0
        %v880 = vadd.f32 %v737, %v879
        %v881 = vpop.f32.mrb[0].mxu0
        %882 = vmatprep.mubr.f32.mxu0 0.0
        %883 = vmatmul.mubr.f32.gmra.mrb[0].mxu0 %v764
        %v884 = vpop.f32.mrb[0].mxu0
        %v885 = vadd.f32 %v737, %v884
        %v886 = vpop.f32.mrb[0].mxu0
        %887 = vmatprep.mubr.f32.mxu0 0.0
        %888 = vmatmul.mubr.f32.gmra.mrb[0].mxu0 %v767
        %v889 = vpop.f32.mrb[0].mxu0
        %v890 = vadd.f32 %v737, %v889
        %v891 = vpop.f32.mrb[0].mxu0
        %892 = vmatprep.mubr.f32.mxu0 0.0
        %893 = vmatmul.mubr.f32.gmra.mrb[0].mxu0 %v770
        %v894 = vpop.f32.mrb[0].mxu0
        %v895 = vadd.f32 %v737, %v894
        %v896 = vpop.f32.mrb[0].mxu0
        %897 = vmatprep.mubr.f32.mxu0 0.0
        %898 = vmatmul.mubr.f32.gmra.mrb[0].mxu0 %v773
        %v899 = vpop.f32.mrb[0].mxu0
        %v900 = vadd.f32 %v737, %v899
        %v901 = vpop.f32.mrb[0].mxu0
        %902 = vmatprep.mubr.f32.mxu0 0.0
        %903 = vmatmul.mubr.f32.gmra.mrb[0].mxu0 %v776
        %v904 = vpop.f32.mrb[0].mxu0
        %v905 = vadd.f32 %v737, %v904
        %v906 = vpop.f32.mrb[0].mxu0
        %907 = vdwg.mxu0
        %v908 = vmax.f32 %v845, 0.0
        %v909 = vmax.f32 %v850, 0.0
        %v910 = vmax.f32 %v855, 0.0
        %v911 = vmax.f32 %v860, 0.0
        %v912 = vmax.f32 %v865, 0.0
        %v913 = vmax.f32 %v870, 0.0
        %v914 = vmax.f32 %v875, 0.0
        %v915 = vmax.f32 %v880, 0.0
        %v916 = vmax.f32 %v885, 0.0
        %v917 = vmax.f32 %v890, 0.0
        %v918 = vmax.f32 %v895, 0.0
        %v919 = vmax.f32 %v900, 0.0
        %v920 = vmax.f32 %v905, 0.0
        %vm921 = vcmp.ne.f32.partialorder %v845, %v845
        %vm922 = vcmp.ne.f32.partialorder %v850, %v850
        %vm923 = vcmp.ne.f32.partialorder %v855, %v855
        %vm924 = vcmp.ne.f32.partialorder %v860, %v860
        %vm925 = vcmp.ne.f32.partialorder %v865, %v865
        %vm926 = vcmp.ne.f32.partialorder %v870, %v870
        %vm927 = vcmp.ne.f32.partialorder %v875, %v875
        %vm928 = vcmp.ne.f32.partialorder %v880, %v880
        %vm929 = vcmp.ne.f32.partialorder %v885, %v885
        %vm930 = vcmp.ne.f32.partialorder %v890, %v890
        %vm931 = vcmp.ne.f32.partialorder %v895, %v895
        %vm932 = vcmp.ne.f32.partialorder %v900, %v900
        %vm933 = vcmp.ne.f32.partialorder %v905, %v905
        %v934 = vadd.f32 %v845, 0.0
        %v935 = vadd.f32 %v850, 0.0
        %v936 = vadd.f32 %v855, 0.0
        %v937 = vadd.f32 %v860, 0.0
        %v938 = vadd.f32 %v865, 0.0
        %v939 = vadd.f32 %v870, 0.0
        %v940 = vadd.f32 %v875, 0.0
        %v941 = vadd.f32 %v880, 0.0
        %v942 = vadd.f32 %v885, 0.0
        %v943 = vadd.f32 %v890, 0.0
        %v944 = vadd.f32 %v895, 0.0
        %v945 = vadd.f32 %v900, 0.0
        %v946 = vadd.f32 %v905, 0.0
        %v947 = vand.u32 2147483647, %v845
        %v948 = vand.u32 2147483647, %v850
        %v949 = vand.u32 2147483647, %v855
        %v950 = vand.u32 2147483647, %v860
        %v951 = vand.u32 2147483647, %v865
        %v952 = vand.u32 2147483647, %v870
        %v953 = vand.u32 2147483647, %v875
        %v954 = vand.u32 2147483647, %v880
        %v955 = vand.u32 2147483647, %v885
        %v956 = vand.u32 2147483647, %v890
        %v957 = vand.u32 2147483647, %v895
        %v958 = vand.u32 2147483647, %v900
        %v959 = vand.u32 2147483647, %v905
        %v960 = vsub.f32 0.0, %v947
        %v961 = vsub.f32 0.0, %v948
        %v962 = vsub.f32 0.0, %v949
        %v963 = vsub.f32 0.0, %v950
        %v964 = vsub.f32 0.0, %v951
        %v965 = vsub.f32 0.0, %v952
        %v966 = vsub.f32 0.0, %v953
        %v967 = vsub.f32 0.0, %v954
        %v968 = vsub.f32 0.0, %v955
        %v969 = vsub.f32 0.0, %v956
        %v970 = vsub.f32 0.0, %v957
        %v971 = vsub.f32 0.0, %v958
        %v972 = vsub.f32 0.0, %v959
        %v973 = vmul.f32 %v960, 1.442695
        %v974 = vpow.pop %v973
        %v975 = vmul.f32 %v961, 1.442695
        %v976 = vpow.pop %v975
        %v977 = vmul.f32 %v962, 1.442695
        %v978 = vpow.pop %v977
        %v979 = vmul.f32 %v963, 1.442695
        %v980 = vpow.pop %v979
        %v981 = vmul.f32 %v964, 1.442695
        %v982 = vpow.pop %v981
        %v983 = vmul.f32 %v965, 1.442695
        %v984 = vpow.pop %v983
        %v985 = vmul.f32 %v966, 1.442695
        %v986 = vpow.pop %v985
        %v987 = vmul.f32 %v967, 1.442695
        %v988 = vpow.pop %v987
        %v989 = vmul.f32 %v968, 1.442695
        %v990 = vpow.pop %v989
        %v991 = vmul.f32 %v969, 1.442695
        %v992 = vpow.pop %v991
        %v993 = vmul.f32 %v970, 1.442695
        %v994 = vpow.pop %v993
        %v995 = vmul.f32 %v971, 1.442695
        %v996 = vpow.pop %v995
        %v997 = vmul.f32 %v972, 1.442695
        %v998 = vpow.pop %v997
        %v999 = vadd.f32 %v974, 1.0
        %v1000 = vlog2.pop %v999
        %v1001 = vmul.f32 %v1000, 0.6931472
        %v1002 = vmul.f32 -0.5, %v974
        %v1003 = vadd.f32 %v1002, 1.0
        %v1004 = vmul.f32 %v1003, %v974
        %v1005 = vand.u32 2147483647, %v974
        %vm1006 = vcmp.lt.f32.partialorder %v1005, 0.0004427343
        %v1007 = vsel %vm1006, %v1004, %v1001
        %v1008 = vadd.f32 %v976, 1.0
        %v1009 = vlog2.pop %v1008
        %v1010 = vmul.f32 %v1009, 0.6931472
        %v1011 = vmul.f32 -0.5, %v976
        %v1012 = vadd.f32 %v1011, 1.0
        %v1013 = vmul.f32 %v1012, %v976
        %v1014 = vand.u32 2147483647, %v976
        %vm1015 = vcmp.lt.f32.partialorder %v1014, 0.0004427343
        %v1016 = vsel %vm1015, %v1013, %v1010
        %v1017 = vadd.f32 %v978, 1.0
        %v1018 = vlog2.pop %v1017
        %v1019 = vmul.f32 %v1018, 0.6931472
        %v1020 = vmul.f32 -0.5, %v978
        %v1021 = vadd.f32 %v1020, 1.0
        %v1022 = vmul.f32 %v1021, %v978
        %v1023 = vand.u32 2147483647, %v978
        %vm1024 = vcmp.lt.f32.partialorder %v1023, 0.0004427343
        %v1025 = vsel %vm1024, %v1022, %v1019
        %v1026 = vadd.f32 %v980, 1.0
        %v1027 = vlog2.pop %v1026
        %v1028 = vmul.f32 %v1027, 0.6931472
        %v1029 = vmul.f32 -0.5, %v980
        %v1030 = vadd.f32 %v1029, 1.0
        %v1031 = vmul.f32 %v1030, %v980
        %v1032 = vand.u32 2147483647, %v980
        %vm1033 = vcmp.lt.f32.partialorder %v1032, 0.0004427343
        %v1034 = vsel %vm1033, %v1031, %v1028
        %v1035 = vadd.f32 %v982, 1.0
        %v1036 = vlog2.pop %v1035
        %v1037 = vmul.f32 %v1036, 0.6931472
        %v1038 = vmul.f32 -0.5, %v982
        %v1039 = vadd.f32 %v1038, 1.0
        %v1040 = vmul.f32 %v1039, %v982
        %v1041 = vand.u32 2147483647, %v982
        %vm1042 = vcmp.lt.f32.partialorder %v1041, 0.0004427343
        %v1043 = vsel %vm1042, %v1040, %v1037
        %v1044 = vadd.f32 %v984, 1.0
        %v1045 = vlog2.pop %v1044
        %v1046 = vmul.f32 %v1045, 0.6931472
        %v1047 = vmul.f32 -0.5, %v984
        %v1048 = vadd.f32 %v1047, 1.0
        %v1049 = vmul.f32 %v1048, %v984
        %v1050 = vand.u32 2147483647, %v984
        %vm1051 = vcmp.lt.f32.partialorder %v1050, 0.0004427343
        %v1052 = vsel %vm1051, %v1049, %v1046
        %v1053 = vadd.f32 %v986, 1.0
        %v1054 = vlog2.pop %v1053
        %v1055 = vmul.f32 %v1054, 0.6931472
        %v1056 = vmul.f32 -0.5, %v986
        %v1057 = vadd.f32 %v1056, 1.0
        %v1058 = vmul.f32 %v1057, %v986
        %v1059 = vand.u32 2147483647, %v986
        %vm1060 = vcmp.lt.f32.partialorder %v1059, 0.0004427343
        %v1061 = vsel %vm1060, %v1058, %v1055
        %v1062 = vadd.f32 %v988, 1.0
        %v1063 = vlog2.pop %v1062
        %v1064 = vmul.f32 %v1063, 0.6931472
        %v1065 = vmul.f32 -0.5, %v988
        %v1066 = vadd.f32 %v1065, 1.0
        %v1067 = vmul.f32 %v1066, %v988
        %v1068 = vand.u32 2147483647, %v988
        %vm1069 = vcmp.lt.f32.partialorder %v1068, 0.0004427343
        %v1070 = vsel %vm1069, %v1067, %v1064
        %v1071 = vadd.f32 %v990, 1.0
        %v1072 = vlog2.pop %v1071
        %v1073 = vmul.f32 %v1072, 0.6931472
        %v1074 = vmul.f32 -0.5, %v990
        %v1075 = vadd.f32 %v1074, 1.0
        %v1076 = vmul.f32 %v1075, %v990
        %v1077 = vand.u32 2147483647, %v990
        %vm1078 = vcmp.lt.f32.partialorder %v1077, 0.0004427343
        %v1079 = vsel %vm1078, %v1076, %v1073
        %v1080 = vadd.f32 %v992, 1.0
        %v1081 = vlog2.pop %v1080
        %v1082 = vmul.f32 %v1081, 0.6931472
        %v1083 = vmul.f32 -0.5, %v992
        %v1084 = vadd.f32 %v1083, 1.0
        %v1085 = vmul.f32 %v1084, %v992
        %v1086 = vand.u32 2147483647, %v992
        %vm1087 = vcmp.lt.f32.partialorder %v1086, 0.0004427343
        %v1088 = vsel %vm1087, %v1085, %v1082
        %v1089 = vadd.f32 %v994, 1.0
        %v1090 = vlog2.pop %v1089
        %v1091 = vmul.f32 %v1090, 0.6931472
        %v1092 = vmul.f32 -0.5, %v994
        %v1093 = vadd.f32 %v1092, 1.0
        %v1094 = vmul.f32 %v1093, %v994
        %v1095 = vand.u32 2147483647, %v994
        %vm1096 = vcmp.lt.f32.partialorder %v1095, 0.0004427343
        %v1097 = vsel %vm1096, %v1094, %v1091
        %v1098 = vadd.f32 %v996, 1.0
        %v1099 = vlog2.pop %v1098
        %v1100 = vmul.f32 %v1099, 0.6931472
        %v1101 = vmul.f32 -0.5, %v996
        %v1102 = vadd.f32 %v1101, 1.0
        %v1103 = vmul.f32 %v1102, %v996
        %v1104 = vand.u32 2147483647, %v996
        %vm1105 = vcmp.lt.f32.partialorder %v1104, 0.0004427343
        %v1106 = vsel %vm1105, %v1103, %v1100
        %v1107 = vadd.f32 %v998, 1.0
        %v1108 = vlog2.pop %v1107
        %v1109 = vmul.f32 %v1108, 0.6931472
        %v1110 = vmul.f32 -0.5, %v998
        %v1111 = vadd.f32 %v1110, 1.0
        %v1112 = vmul.f32 %v1111, %v998
        %v1113 = vand.u32 2147483647, %v998
        %vm1114 = vcmp.lt.f32.partialorder %v1113, 0.0004427343
        %v1115 = vsel %vm1114, %v1112, %v1109
        %v1116 = vadd.f32 %v908, %v1007
        %v1117 = vadd.f32 %v909, %v1016
        %v1118 = vadd.f32 %v910, %v1025
        %v1119 = vadd.f32 %v911, %v1034
        %v1120 = vadd.f32 %v912, %v1043
        %v1121 = vadd.f32 %v913, %v1052
        %v1122 = vadd.f32 %v914, %v1061
        %v1123 = vadd.f32 %v915, %v1070
        %v1124 = vadd.f32 %v916, %v1079
        %v1125 = vadd.f32 %v917, %v1088
        %v1126 = vadd.f32 %v918, %v1097
        %v1127 = vadd.f32 %v919, %v1106
        %v1128 = vadd.f32 %v920, %v1115
        %v1129 = vsel %vm921, %v934, %v1116
        %v1130 = vsel %vm922, %v935, %v1117
        %v1131 = vsel %vm923, %v936, %v1118
        %v1132 = vsel %vm924, %v937, %v1119
        %v1133 = vsel %vm925, %v938, %v1120
        %v1134 = vsel %vm926, %v939, %v1121
        %v1135 = vsel %vm927, %v940, %v1122
        %v1136 = vsel %vm928, %v941, %v1123
        %v1137 = vsel %vm929, %v942, %v1124
        %v1138 = vsel %vm930, %v943, %v1125
        %v1139 = vsel %vm931, %v944, %v1126
        %v1140 = vsel %vm932, %v945, %v1127
        %v1141 = vsel %vm933, %v946, %v1128
        %v1142 = vld [vmem:[%s5] sm:$0xff]
        %v1143 = vld [vmem:[%s5 + $0x8] sm:$0xff]
        %v1144 = vld [vmem:[%s5 + $0x10] sm:$0xff]
        %v1145 = vld [vmem:[%s5 + $0x18] sm:$0xff]
        %v1146 = vld [vmem:[%s6] sm:$0x1]
        %v1148 = vlaneseq
        %v1149 = vshrl.u32 %v1148, 7
        %v1150 = vsub.s32 0, %v1149
        %v1151 = vrot.slane %v1146, %v1150
        %v1154 = vsel %vm324, %v1129, 0
        %v1157 = vsel %vm324, %v1130, 0
        %v1160 = vsel %vm324, %v1131, 0
        %v1163 = vsel %vm324, %v1132, 0
        %v1166 = vsel %vm324, %v1133, 0
        %v1169 = vsel %vm324, %v1134, 0
        %v1172 = vsel %vm324, %v1135, 0
        %v1175 = vsel %vm324, %v1136, 0
        %v1178 = vsel %vm324, %v1137, 0
        %v1181 = vsel %vm324, %v1138, 0
        %v1184 = vsel %vm324, %v1139, 0
        %v1187 = vsel %vm324, %v1140, 0
        %v1190 = vsel %vm324, %v1141, 0
        %1192 = vmatprep.subr.mxu0 0.0
        %1193 = vmatpush1.msra.mxu0 %v1142
        %1194 = vmatprep.subr.mxu0 0.0
        %1195 = vmatpush1.msra.mxu0 %v1143
        %1196 = vmatprep.subr.mxu0 0.0
        %1197 = vmatpush1.msra.mxu0 %v1144
        %1198 = vmatprep.subr.mxu0 0.0
        %1199 = vmatpush1.msra.mxu0 %v1145
        %1200 = vmatprep.subr.mxu0 0.0
        %1201 = vmatpush1.msra.mxu0 0.0
        %1202 = vmatprep.subr.mxu0 0.0
        %1203 = vmatpush1.msra.mxu0 0.0
        %1204 = vmatprep.subr.mxu0 0.0
        %1205 = vmatpush1.msra.mxu0 0.0
        %1206 = vmatprep.subr.mxu0 0.0
        %1207 = vmatpush1.msra.mxu0 0.0
        %1208 = vmatprep.subr.mxu0 0.0
        %1209 = vmatpush1.msra.mxu0 0.0
        %1210 = vmatprep.subr.mxu0 0.0
        %1211 = vmatpush1.msra.mxu0 0.0
        %1212 = vmatprep.subr.mxu0 0.0
        %1213 = vmatpush1.msra.mxu0 0.0
        %1214 = vmatprep.subr.mxu0 0.0
        %1215 = vmatpush1.msra.mxu0 0.0
        %1216 = vmatprep.subr.mxu0 0.0
        %1217 = vmatpush1.msra.mxu0 0.0
        %1218 = vmatprep.subr.mxu0 0.0
        %1219 = vmatpush1.msra.mxu0 0.0
        %1220 = vmatprep.subr.mxu0 0.0
        %1221 = vmatpush1.msra.mxu0 0.0
        %1222 = vmatprep.subr.mxu0 0.0
        %1223 = vmatpush1.msra.mxu0 0.0
        %1224 = vmatprep.subr.mxu0 0.0
        %1225 = vmatpush1.msra.mxu0 0.0
        %1226 = vmatprep.subr.mxu0 0.0
        %1227 = vmatpush1.msra.mxu0 0.0
        %1228 = vmatprep.subr.mxu0 0.0
        %1229 = vmatpush1.msra.mxu0 0.0
        %1230 = vmatprep.subr.mxu0 0.0
        %1231 = vmatpush1.msra.mxu0 0.0
        %1232 = vmatprep.subr.mxu0 0.0
        %1233 = vmatpush1.msra.mxu0 0.0
        %1234 = vmatprep.subr.mxu0 0.0
        %1235 = vmatpush1.msra.mxu0 0.0
        %1236 = vmatprep.subr.mxu0 0.0
        %1237 = vmatpush1.msra.mxu0 0.0
        %1238 = vmatprep.subr.mxu0 0.0
        %1239 = vmatpush1.msra.mxu0 0.0
        %1240 = vmatprep.subr.mxu0 0.0
        %1241 = vmatpush1.msra.mxu0 0.0
        %1242 = vmatprep.subr.mxu0 0.0
        %1243 = vmatpush1.msra.mxu0 0.0
        %1244 = vmatprep.subr.mxu0 0.0
        %1245 = vmatpush1.msra.mxu0 0.0
        %1246 = vmatprep.subr.mxu0 0.0
        %1247 = vmatpush1.msra.mxu0 0.0
        %1248 = vmatprep.subr.mxu0 0.0
        %1249 = vmatpush1.msra.mxu0 0.0
        %1250 = vmatprep.subr.mxu0 0.0
        %1251 = vmatpush1.msra.mxu0 0.0
        %1252 = vmatprep.subr.mxu0 0.0
        %1253 = vmatpush1.msra.mxu0 0.0
        %1254 = vmatprep.subr.mxu0 0.0
        %1255 = vmatpush1.msra.mxu0 0.0
        %1256 = vmatprep.mubr.f32.mxu0 0.0
        %1257 = vmatmul.mubr.f32.gmra.mrb[0].mxu0 %v1154
        %v1258 = vpop.f32.mrb[0].mxu0
        %v1259 = vadd.f32 %v1151, %v1258
        %v1260 = vpop.f32.mrb[0].mxu0
        %1261 = vmatprep.mubr.f32.mxu0 0.0
        %1262 = vmatmul.mubr.f32.gmra.mrb[0].mxu0 %v1157
        %v1263 = vpop.f32.mrb[0].mxu0
        %v1264 = vadd.f32 %v1151, %v1263
        %v1265 = vpop.f32.mrb[0].mxu0
        %1266 = vmatprep.mubr.f32.mxu0 0.0
        %1267 = vmatmul.mubr.f32.gmra.mrb[0].mxu0 %v1160
        %v1268 = vpop.f32.mrb[0].mxu0
        %v1269 = vadd.f32 %v1151, %v1268
        %v1270 = vpop.f32.mrb[0].mxu0
        %1271 = vmatprep.mubr.f32.mxu0 0.0
        %1272 = vmatmul.mubr.f32.gmra.mrb[0].mxu0 %v1163
        %v1273 = vpop.f32.mrb[0].mxu0
        %v1274 = vadd.f32 %v1151, %v1273
        %v1275 = vpop.f32.mrb[0].mxu0
        %1276 = vmatprep.mubr.f32.mxu0 0.0
        %1277 = vmatmul.mubr.f32.gmra.mrb[0].mxu0 %v1166
        %v1278 = vpop.f32.mrb[0].mxu0
        %v1279 = vadd.f32 %v1151, %v1278
        %v1280 = vpop.f32.mrb[0].mxu0
        %1281 = vmatprep.mubr.f32.mxu0 0.0
        %1282 = vmatmul.mubr.f32.gmra.mrb[0].mxu0 %v1169
        %v1283 = vpop.f32.mrb[0].mxu0
        %v1284 = vadd.f32 %v1151, %v1283
        %v1285 = vpop.f32.mrb[0].mxu0
        %1286 = vmatprep.mubr.f32.mxu0 0.0
        %1287 = vmatmul.mubr.f32.gmra.mrb[0].mxu0 %v1172
        %v1288 = vpop.f32.mrb[0].mxu0
        %v1289 = vadd.f32 %v1151, %v1288
        %v1290 = vpop.f32.mrb[0].mxu0
        %1291 = vmatprep.mubr.f32.mxu0 0.0
        %1292 = vmatmul.mubr.f32.gmra.mrb[0].mxu0 %v1175
        %v1293 = vpop.f32.mrb[0].mxu0
        %v1294 = vadd.f32 %v1151, %v1293
        %v1295 = vpop.f32.mrb[0].mxu0
        %1296 = vmatprep.mubr.f32.mxu0 0.0
        %1297 = vmatmul.mubr.f32.gmra.mrb[0].mxu0 %v1178
        %v1298 = vpop.f32.mrb[0].mxu0
        %v1299 = vadd.f32 %v1151, %v1298
        %v1300 = vpop.f32.mrb[0].mxu0
        %1301 = vmatprep.mubr.f32.mxu0 0.0
        %1302 = vmatmul.mubr.f32.gmra.mrb[0].mxu0 %v1181
        %v1303 = vpop.f32.mrb[0].mxu0
        %v1304 = vadd.f32 %v1151, %v1303
        %v1305 = vpop.f32.mrb[0].mxu0
        %1306 = vmatprep.mubr.f32.mxu0 0.0
        %1307 = vmatmul.mubr.f32.gmra.mrb[0].mxu0 %v1184
        %v1308 = vpop.f32.mrb[0].mxu0
        %v1309 = vadd.f32 %v1151, %v1308
        %v1310 = vpop.f32.mrb[0].mxu0
        %1311 = vmatprep.mubr.f32.mxu0 0.0
        %1312 = vmatmul.mubr.f32.gmra.mrb[0].mxu0 %v1187
        %v1313 = vpop.f32.mrb[0].mxu0
        %v1314 = vadd.f32 %v1151, %v1313
        %v1315 = vpop.f32.mrb[0].mxu0
        %1316 = vmatprep.mubr.f32.mxu0 0.0
        %1317 = vmatmul.mubr.f32.gmra.mrb[0].mxu0 %v1190
        %v1318 = vpop.f32.mrb[0].mxu0
        %v1319 = vadd.f32 %v1151, %v1318
        %v1320 = vpop.f32.mrb[0].mxu0
        %1321 = vdwg.mxu0
        %vm1322 = vcmask 23552
        %1323 = vst.msk [vmem:[%s280] sm:$0xff] %vm1322, %v1259
        %1324 = vst.msk [vmem:[%s280 + $0x8] sm:$0xff] %vm1322, %v1264
        %1325 = vst.msk [vmem:[%s280 + $0x10] sm:$0xff] %vm1322, %v1269
        %1326 = vst.msk [vmem:[%s280 + $0x18] sm:$0xff] %vm1322, %v1274
        %1327 = vst.msk [vmem:[%s280 + $0x20] sm:$0xff] %vm1322, %v1279
        %1328 = vst.msk [vmem:[%s280 + $0x28] sm:$0xff] %vm1322, %v1284
        %1329 = vst.msk [vmem:[%s280 + $0x30] sm:$0xff] %vm1322, %v1289
        %1330 = vst.msk [vmem:[%s280 + $0x38] sm:$0xff] %vm1322, %v1294
        %1331 = vst.msk [vmem:[%s280 + $0x40] sm:$0xff] %vm1322, %v1299
        %1332 = vst.msk [vmem:[%s280 + $0x48] sm:$0xff] %vm1322, %v1304
        %1333 = vst.msk [vmem:[%s280 + $0x50] sm:$0xff] %vm1322, %v1309
        %1334 = vst.msk [vmem:[%s280 + $0x58] sm:$0xff] %vm1322, %v1314
        %1335 = vst.msk [vmem:[%s280 + $0x60] sm:$0xff] %vm1322, %v1319
        %s1336 = sand.u32 %s178, 1
        %s1337 = sand.u32 %s178, 1
        %s1338 = smul.addr %s1337, 104
        %s1339 = scalar_lea.vmem [#allocation2], %s1338
        // Predicated region
        $region49: #{tpu_custom_call.1} parent=47 // pred_check
          %p1340 = pneg %p188
        $region50: #{tpu_custom_call.1} parent=47 // pred_check_branch
          %1342 = sbr.rel (%p1340) target = $region52
        $region51: #{tpu_custom_call.1} parent=47 // pred_region
          %s1343 = smul.u32 13, %s18
          %s1344 = ssub.s32 25, %s1343
          %p1345 = scmp.lt.s32.totalorder %s1344, 13
          %s1346 = scalar_select %p1345, %s1344, 13
          %s1347 = smul.u32 128, %s1346
          %p1348 = scmp.ne.s32.totalorder 0, %s1347
          %s1349 = smul.addr %s1343, 8
          %s1350 = scalar_lea.vmem %s7, %s1349
          // Predicated region
          $region53: #{tpu_custom_call.1} parent=51 // pred_check
            %p1351 = pneg %p1348
          $region54: #{tpu_custom_call.1} parent=51 // pred_check_branch
            %1353 = sbr.rel (%p1351) target = $region56
          $region55: #{tpu_custom_call.1} parent=51 // pred_region
            // Predicated region
            $region57: #{tpu_custom_call.1} parent=55 // pred_check
              _
            $region58: #{tpu_custom_call.1} parent=55 // pred_check_branch
              %1355 = sbr.rel (0) target = $region60
            $region59: #{tpu_custom_call.1} parent=55 // pred_region
              // Predicated region
              $region79: #{tpu_custom_call.1} parent=59 // pred_check
                _
              $region80: #{tpu_custom_call.1} parent=59 // pred_check_branch
                %1429 = sbr.rel (0) target = $region82
              $region81: #{tpu_custom_call.1} parent=59 // pred_region
                %s1430 = sdiv.u32.pop %s1346, 13
                %s1431 = srem.u32.pop %s1346, 13
                // While loop
                $region83: #{tpu_custom_call.1} parent=81 // loop_pre_header
                  _
                $region84: #{tpu_custom_call.1} parent=81 // loop_header
                  %s1433 = sphi 0, %s1435
                  %p1434 = scmp.ge.s32.totalorder %s1433, %s1430
                  %s1438 = sphi 0, %s1469
                  %s1439 = sphi %s1339, %s1472
                  %s1440 = sphi %s1350, %s1473
                $region85: #{tpu_custom_call.1} parent=81 // loop_header_branch
                  %1437 = sbr.rel (%p1434) target = $region89
                $region86: #{tpu_custom_call.1} parent=81 // loop_body
                  %v1441 = vld [vmem:[%s1439] sm:$0xff]
                  %1442 = vst [vmem:[%s1440] sm:$0xff] %v1441
                  %v1443 = vld [vmem:[%s1439 + $0x8] sm:$0xff]
                  %1444 = vst [vmem:[%s1440 + $0x8] sm:$0xff] %v1443
                  %v1445 = vld [vmem:[%s1439 + $0x10] sm:$0xff]
                  %1446 = vst [vmem:[%s1440 + $0x10] sm:$0xff] %v1445
                  %v1447 = vld [vmem:[%s1439 + $0x18] sm:$0xff]
                  %1448 = vst [vmem:[%s1440 + $0x18] sm:$0xff] %v1447
                  %v1449 = vld [vmem:[%s1439 + $0x20] sm:$0xff]
                  %1450 = vst [vmem:[%s1440 + $0x20] sm:$0xff] %v1449
                  %v1451 = vld [vmem:[%s1439 + $0x28] sm:$0xff]
                  %1452 = vst [vmem:[%s1440 + $0x28] sm:$0xff] %v1451
                  %v1453 = vld [vmem:[%s1439 + $0x30] sm:$0xff]
                  %1454 = vst [vmem:[%s1440 + $0x30] sm:$0xff] %v1453
                  %v1455 = vld [vmem:[%s1439 + $0x38] sm:$0xff]
                  %1456 = vst [vmem:[%s1440 + $0x38] sm:$0xff] %v1455
                  %v1457 = vld [vmem:[%s1439 + $0x40] sm:$0xff]
                  %1458 = vst [vmem:[%s1440 + $0x40] sm:$0xff] %v1457
                  %v1459 = vld [vmem:[%s1439 + $0x48] sm:$0xff]
                  %1460 = vst [vmem:[%s1440 + $0x48] sm:$0xff] %v1459
                  %v1461 = vld [vmem:[%s1439 + $0x50] sm:$0xff]
                  %1462 = vst [vmem:[%s1440 + $0x50] sm:$0xff] %v1461
                  %v1463 = vld [vmem:[%s1439 + $0x58] sm:$0xff]
                  %1464 = vst [vmem:[%s1440 + $0x58] sm:$0xff] %v1463
                  %v1465 = vld [vmem:[%s1439 + $0x60] sm:$0xff]
                  %1466 = vst [vmem:[%s1440 + $0x60] sm:$0xff] %v1465
                  %s1467 = sadd.s32 1, %s1438
                  %p1468 = scmp.ge.s32.totalorder %s1467, %s1430
                  %s1469 = scalar_select %p1468, 0, %s1467
                  %s1470 = smul.u32 %s1469, 104
                  %s1471 = smul.u32 %s1469, 104
                  %s1472 = scalar_lea.vmem %s1339, %s1470 [#allocation2]
                  %s1473 = scalar_lea.vmem %s1350, %s1471
                $region87: #{tpu_custom_call.1} parent=81 // loop_footer
                  %s1435 = sadd.s32 %s1433, 1
                $region88: #{tpu_custom_call.1} parent=81 // loop_footer_branch
                  %1432 = sbr.rel target = $region84
                $region89: #{tpu_custom_call.1} parent=81 // loop_exit
                  _
                %s1474 = sdiv.u32.pop %s1346, 13
                %s1475 = srem.u32.pop %s1346, 13
                %s1476 = smul.u32 %s1474, 13
                %s1477 = smul.u32 8, %s1476
                %s1478 = scalar_lea.vmem %s1339, %s1477 [#allocation2]
                %s1479 = smul.u32 8, %s1476
                %s1480 = scalar_lea.vmem %s1350, %s1479
                // While loop
                $region90: #{tpu_custom_call.1} parent=81 // loop_pre_header
                  _
                $region91: #{tpu_custom_call.1} parent=81 // loop_header
                  %s1482 = sphi 0, %s1484
                  %p1483 = scmp.ge.s32.totalorder %s1482, %s1475
                  %s1487 = sphi 0, %s1494
                  %s1488 = sphi %s1478, %s1497
                  %s1489 = sphi %s1480, %s1498
                $region92: #{tpu_custom_call.1} parent=81 // loop_header_branch
                  %1486 = sbr.rel (%p1483) target = $region96
                $region93: #{tpu_custom_call.1} parent=81 // loop_body
                  %v1490 = vld [vmem:[%s1488] sm:$0xff]
                  %1491 = vst [vmem:[%s1489] sm:$0xff] %v1490
                  %s1492 = sadd.s32 1, %s1487
                  %p1493 = scmp.ge.s32.totalorder %s1492, %s1475
                  %s1494 = scalar_select %p1493, 0, %s1492
                  %s1495 = smul.u32 %s1494, 8
                  %s1496 = smul.u32 %s1494, 8
                  %s1497 = scalar_lea.vmem %s1478, %s1495 [#allocation2]
                  %s1498 = scalar_lea.vmem %s1480, %s1496
                $region94: #{tpu_custom_call.1} parent=81 // loop_footer
                  %s1484 = sadd.s32 %s1482, 1
                $region95: #{tpu_custom_call.1} parent=81 // loop_footer_branch
                  %1481 = sbr.rel target = $region91
                $region96: #{tpu_custom_call.1} parent=81 // loop_exit
                  _
              $region82: #{tpu_custom_call.1} parent=59 // pred_fallthru
                _
              // Predicated region
              $region97: #{tpu_custom_call.1} parent=59 // pred_check
                _
              $region98: #{tpu_custom_call.1} parent=59 // pred_check_branch
                %1500 = sbr.rel target = $region100
              $region99: #{tpu_custom_call.1} parent=59 // pred_region
                _
              $region100: #{tpu_custom_call.1} parent=59 // pred_fallthru
                _
            $region60: #{tpu_custom_call.1} parent=55 // pred_fallthru
              _
            // Predicated region
            $region61: #{tpu_custom_call.1} parent=55 // pred_check
              _
            $region62: #{tpu_custom_call.1} parent=55 // pred_check_branch
              %1357 = sbr.rel target = $region64
            $region63: #{tpu_custom_call.1} parent=55 // pred_region
              %s1359 = sdiv.u32.pop %s1346, 13
              %s1360 = srem.u32.pop %s1346, 13
              // While loop
              $region65: #{tpu_custom_call.1} parent=63 // loop_pre_header
                _
              $region66: #{tpu_custom_call.1} parent=63 // loop_header
                %s1362 = sphi 0, %s1364
                %p1363 = scmp.ge.s32.totalorder %s1362, %s1359
                %s1367 = sphi 0, %s1398
                %s1368 = sphi %s1339, %s1401
                %s1369 = sphi %s1350, %s1402
              $region67: #{tpu_custom_call.1} parent=63 // loop_header_branch
                %1366 = sbr.rel (%p1363) target = $region71
              $region68: #{tpu_custom_call.1} parent=63 // loop_body
                %v1370 = vld [vmem:[%s1368] sm:$0xff]
                %1371 = vst [vmem:[%s1369] sm:$0xff] %v1370
                %v1372 = vld [vmem:[%s1368 + $0x8] sm:$0xff]
                %1373 = vst [vmem:[%s1369 + $0x8] sm:$0xff] %v1372
                %v1374 = vld [vmem:[%s1368 + $0x10] sm:$0xff]
                %1375 = vst [vmem:[%s1369 + $0x10] sm:$0xff] %v1374
                %v1376 = vld [vmem:[%s1368 + $0x18] sm:$0xff]
                %1377 = vst [vmem:[%s1369 + $0x18] sm:$0xff] %v1376
                %v1378 = vld [vmem:[%s1368 + $0x20] sm:$0xff]
                %1379 = vst [vmem:[%s1369 + $0x20] sm:$0xff] %v1378
                %v1380 = vld [vmem:[%s1368 + $0x28] sm:$0xff]
                %1381 = vst [vmem:[%s1369 + $0x28] sm:$0xff] %v1380
                %v1382 = vld [vmem:[%s1368 + $0x30] sm:$0xff]
                %1383 = vst [vmem:[%s1369 + $0x30] sm:$0xff] %v1382
                %v1384 = vld [vmem:[%s1368 + $0x38] sm:$0xff]
                %1385 = vst [vmem:[%s1369 + $0x38] sm:$0xff] %v1384
                %v1386 = vld [vmem:[%s1368 + $0x40] sm:$0xff]
                %1387 = vst [vmem:[%s1369 + $0x40] sm:$0xff] %v1386
                %v1388 = vld [vmem:[%s1368 + $0x48] sm:$0xff]
                %1389 = vst [vmem:[%s1369 + $0x48] sm:$0xff] %v1388
                %v1390 = vld [vmem:[%s1368 + $0x50] sm:$0xff]
                %1391 = vst [vmem:[%s1369 + $0x50] sm:$0xff] %v1390
                %v1392 = vld [vmem:[%s1368 + $0x58] sm:$0xff]
                %1393 = vst [vmem:[%s1369 + $0x58] sm:$0xff] %v1392
                %v1394 = vld [vmem:[%s1368 + $0x60] sm:$0xff]
                %1395 = vst [vmem:[%s1369 + $0x60] sm:$0xff] %v1394
                %s1396 = sadd.s32 1, %s1367
                %p1397 = scmp.ge.s32.totalorder %s1396, %s1359
                %s1398 = scalar_select %p1397, 0, %s1396
                %s1399 = smul.u32 %s1398, 104
                %s1400 = smul.u32 %s1398, 104
                %s1401 = scalar_lea.vmem %s1339, %s1399 [#allocation2]
                %s1402 = scalar_lea.vmem %s1350, %s1400
              $region69: #{tpu_custom_call.1} parent=63 // loop_footer
                %s1364 = sadd.s32 %s1362, 1
              $region70: #{tpu_custom_call.1} parent=63 // loop_footer_branch
                %1361 = sbr.rel target = $region66
              $region71: #{tpu_custom_call.1} parent=63 // loop_exit
                _
              %s1403 = sdiv.u32.pop %s1346, 13
              %s1404 = srem.u32.pop %s1346, 13
              %s1405 = smul.u32 %s1403, 13
              %s1406 = smul.u32 8, %s1405
              %s1407 = scalar_lea.vmem %s1339, %s1406 [#allocation2]
              %s1408 = smul.u32 8, %s1405
              %s1409 = scalar_lea.vmem %s1350, %s1408
              // While loop
              $region72: #{tpu_custom_call.1} parent=63 // loop_pre_header
                _
              $region73: #{tpu_custom_call.1} parent=63 // loop_header
                %s1411 = sphi 0, %s1413
                %p1412 = scmp.ge.s32.totalorder %s1411, %s1404
                %s1416 = sphi 0, %s1423
                %s1417 = sphi %s1407, %s1426
                %s1418 = sphi %s1409, %s1427
              $region74: #{tpu_custom_call.1} parent=63 // loop_header_branch
                %1415 = sbr.rel (%p1412) target = $region78
              $region75: #{tpu_custom_call.1} parent=63 // loop_body
                %v1419 = vld [vmem:[%s1417] sm:$0xff]
                %1420 = vst [vmem:[%s1418] sm:$0xff] %v1419
                %s1421 = sadd.s32 1, %s1416
                %p1422 = scmp.ge.s32.totalorder %s1421, %s1404
                %s1423 = scalar_select %p1422, 0, %s1421
                %s1424 = smul.u32 %s1423, 8
                %s1425 = smul.u32 %s1423, 8
                %s1426 = scalar_lea.vmem %s1407, %s1424 [#allocation2]
                %s1427 = scalar_lea.vmem %s1409, %s1425
              $region76: #{tpu_custom_call.1} parent=63 // loop_footer
                %s1413 = sadd.s32 %s1411, 1
              $region77: #{tpu_custom_call.1} parent=63 // loop_footer_branch
                %1410 = sbr.rel target = $region73
              $region78: #{tpu_custom_call.1} parent=63 // loop_exit
                _
            $region64: #{tpu_custom_call.1} parent=55 // pred_fallthru
              _
          $region56: #{tpu_custom_call.1} parent=51 // pred_fallthru
            _
          %1501 = vnop
        $region52: #{tpu_custom_call.1} parent=47 // pred_fallthru
          _
      $region48: #{tpu_custom_call.1} parent=5 // pred_fallthru
        _
      %p1502 = scmp.le.s32.totalorder 2, %s13
      // Predicated region
      $region101: #{tpu_custom_call.1} parent=5 // pred_check
        %p1503 = pneg %p1502
      $region102: #{tpu_custom_call.1} parent=5 // pred_check_branch
        %1505 = sbr.rel (%p1503) target = $region104
      $region103: #{tpu_custom_call.1} parent=5 // pred_region
        %s1506 = ssub.s32 %s13, 2
        // Predicated region
        $region105: #{tpu_custom_call.1} parent=103 // pred_check
          %p1507 = pneg %p194
        $region106: #{tpu_custom_call.1} parent=103 // pred_check_branch
          %1509 = sbr.rel (%p1507) target = $region108
        $region107: #{tpu_custom_call.1} parent=103 // pred_region
          %s1510 = sand.u32 %s179, 1
          %s1511 = sand.u32 %s179, 1
          %s1512 = smul.addr %s1511, 104
          %s1513 = scalar_lea.vmem [#allocation2], %s1512
        $region108: #{tpu_custom_call.1} parent=103 // pred_fallthru
          _
      $region104: #{tpu_custom_call.1} parent=5 // pred_fallthru
        _
    $region6: #{tpu_custom_call.1} parent=1 // loop_footer
      %s17 = sadd.s32 1, %s13
    $region7: #{tpu_custom_call.1} parent=1 // loop_footer_branch
      %12 = sbr.rel target = $region3
    $region8: #{tpu_custom_call.1} parent=1 // loop_exit
      _

</llo_original>
